<compile_context>
chip_gen: v7x
topology: tpu7x:2x2x1
jax: 0.10.0
libtpu: 0.0.40
codegen_flags: <defaults>
</compile_context>

<pallas_src>
import jax
import jax.numpy as jnp
from jax.experimental import pallas as pl
from jax.experimental.pallas import tpu as pltpu


# ----------------------------------------------------------------------------
# Tile selection: lane-dense pixel tiles, sized for the VMEM budget.
# ----------------------------------------------------------------------------
def _choose_tile_hw(HW, C, K, itemsize):
    """Pick a pixel-tile width (multiple of 128) targeting ~8 MiB of
    double-buffered logits blocks across the K heads."""
    budget = 8 * 1024 * 1024
    t = budget // max(1, 2 * K * C * itemsize)
    t = max(128, min(32768, (t // 128) * 128))
    if HW <= t:
        return HW          # single full-extent tile: always layout-legal
    return t               # multiple of 128; ragged last tile is masked in-kernel


# ----------------------------------------------------------------------------
# Pallas kernel: fused CE partial sums for K logit heads sharing one label map.
# Refs: labels, logits_0..logits_{K-1}, sum_0..sum_{K-1}, count
# ----------------------------------------------------------------------------
def _make_ce_kernel(K, C, HW, TILE_HW):
    def kernel(*refs):
        labels_ref = refs[0]                  # (1, 1, TILE_HW) int32
        logit_refs = refs[1:1 + K]            # each (1, C, TILE_HW)
        sum_refs = refs[1 + K:1 + 2 * K]      # each (1, 1, TILE_HW) f32
        cnt_ref = refs[1 + 2 * K]             # (1, 1, TILE_HW) f32

        t = pl.program_id(1)

        @pl.when(t == 0)
        def _init():
            for r in sum_refs:
                r[...] = jnp.zeros_like(r)
            cnt_ref[...] = jnp.zeros_like(cnt_ref)

        lbl = labels_ref[0]                                          # (1, TILE_HW)
        pix = t * TILE_HW + jax.lax.broadcasted_iota(
            jnp.int32, (1, TILE_HW), 1)
        in_range = pix < HW                                          # ragged-tile mask
        # PyTorch default ignore_index=-100: any negative label is ignored.
        validf = jnp.logical_and(in_range, lbl >= 0).astype(jnp.float32)

        # One-hot of the target class, shared by all K heads (hoisted).
        class_iota = jax.lax.broadcasted_iota(jnp.int32, (C, TILE_HW), 0)
        onehot = (class_iota == lbl).astype(jnp.float32)             # (C, TILE_HW)

        cnt_ref[...] += validf[None]

        for k in range(K):
            x = logit_refs[k][0].astype(jnp.float32)                 # (C, TILE_HW)
            x = jnp.where(in_range, x, 0.0)                          # scrub OOB lanes
            m = jnp.max(x, axis=0, keepdims=True)                    # (1, TILE_HW)
            lse = m + jnp.log(jnp.sum(jnp.exp(x - m), axis=0, keepdims=True))
            picked = jnp.sum(x * onehot, axis=0, keepdims=True)      # (1, TILE_HW)
            sum_refs[k][...] += ((lse - picked) * validf)[None]

    return kernel


def fused_cross_entropy_means(logits_list, labels_nhw):
    """Mean softmax CE (matching nn.CrossEntropyLoss(reduction='mean')) for each
    logits tensor in `logits_list` against the shared `labels`, in one kernel."""
    K = len(logits_list)
    N, C, H, W = logits_list[0].shape
    HW = H * W

    xs = [l.reshape(N, C, HW) for l in logits_list]          # free reshapes
    y = labels_nhw.reshape(N, 1, HW).astype(jnp.int32)

    itemsize = max(jnp.dtype(l.dtype).itemsize for l in logits_list)
    TILE_HW = _choose_tile_hw(HW, C, K, itemsize)
    T = pl.cdiv(HW, TILE_HW)

    kernel = _make_ce_kernel(K, C, HW, TILE_HW)

    in_specs = [pl.BlockSpec((1, 1, TILE_HW), lambda n, t: (n, 0, t))]
    in_specs += [pl.BlockSpec((1, C, TILE_HW), lambda n, t: (n, 0, t))
                 for _ in range(K)]

    out_shape = tuple(jax.ShapeDtypeStruct((N, 1, TILE_HW), jnp.float32)
                      for _ in range(K + 1))
    out_specs = tuple(pl.BlockSpec((1, 1, TILE_HW), lambda n, t: (n, 0, 0))
                      for _ in range(K + 1))

    results = pl.pallas_call(
        kernel,
        out_shape=out_shape,
        grid=(N, T),
        in_specs=in_specs,
        out_specs=out_specs,
        compiler_params=pltpu.CompilerParams(
            dimension_semantics=("parallel", "arbitrary")),
    )(y, *xs)

    # Tiny final reductions (K+1 slabs of N*TILE_HW f32) done in XLA.
    cnt = jnp.sum(results[K])          # if every label is ignored -> 0/0 = NaN, like torch
    return [jnp.sum(results[k]) / cnt for k in range(K)]


# ----------------------------------------------------------------------------
# Forward pass of DynamicEnsembleLoss_No_Dis (JAX glue around the fused kernel).
# ----------------------------------------------------------------------------
def dynamic_ensemble_loss_no_dis(
    outputs,
    labels,
    *,
    epoch=0,
    max_alpha=0.3,
    max_beta=0.1,
    max_loss_estimate=3.0,
    use_area_loss=True,
    warmup_epochs=0,
    transition_epochs=5,
):
    progress = min(1.0, max(0.0, (epoch - warmup_epochs) / transition_epochs))

    # Collect every logits tensor that the PyTorch forward would evaluate and
    # run them through ONE fused pallas_call.
    logit_list = [outputs['out']]
    has_teacher = 'distill_teacher' in outputs
    if has_teacher:
        logit_list.append(outputs['distill_teacher'])

    area_list = []
    run_area = (progress > 0.0 and use_area_loss and 'area_logits' in outputs
                and outputs['area_logits'] is not None)
    if run_area:
        area_list = list(outputs['area_logits'])
        logit_list.extend(area_list)

    means = fused_cross_entropy_means(logit_list, labels)

    idx = 0
    loss_fused = means[idx]; idx += 1
    if has_teacher:
        loss_global = means[idx]; idx += 1
    else:
        loss_global = jnp.float32(0.0)
    area_means = means[idx:]

    # torch: with torch.no_grad(): loss_factor = 1 - min(loss_fused.item()/max_loss_estimate, 1)
    loss_factor = 1.0 - jnp.minimum(
        jax.lax.stop_gradient(loss_fused) / max_loss_estimate, 1.0)

    fused_weight = 0.2 + 0.8 * progress
    global_weight = 1.0 - fused_weight
    alpha = max_alpha * loss_factor * progress     # computed but unused in loss_total (matches torch)
    beta = max_beta * loss_factor * progress if use_area_loss else 0.0
    gamma = 0.1 * progress                         # computed but unused (matches torch)

    loss_total = fused_weight * loss_fused + global_weight * loss_global
    loss_area = jnp.float32(0.0)
    loss_area_distill = jnp.float32(0.0)

    if run_area and len(area_means) > 0:
        loss_area = sum(area_means) / len(area_means)
        loss_total = loss_total + beta * loss_area

    return {
        'loss': loss_total,
        'loss_fused': jax.lax.stop_gradient(loss_fused),
        'loss_global': jax.lax.stop_gradient(loss_global),
        'loss_area': jax.lax.stop_gradient(loss_area),
        'loss_area_distill': jax.lax.stop_gradient(loss_area_distill),
        'alpha': alpha,
        'beta': beta,
        'gamma': gamma,
        'fused_weight': fused_weight,
        'progress': progress,
    }


# ----------------------------------------------------------------------------
# Pure-JAX reference (for a light sanity check in __main__).
# ----------------------------------------------------------------------------
def _ref_ce_mean(logits_nchw, labels_nhw):
    C = logits_nchw.shape[1]
    x = jnp.transpose(logits_nchw, (0, 2, 3, 1)).reshape(-1, C).astype(jnp.float32)
    y = labels_nhw.reshape(-1)
    logp = jax.nn.log_softmax(x, axis=-1)
    picked = jnp.take_along_axis(logp, y[:, None], axis=-1)[:, 0]
    return -jnp.mean(picked)


if __name__ == "__main__":
    # Small synthetic shapes consistent with a segmentation loss:
    # logits (N, C, H, W) = (2, 4, 16, 16), labels (N, H, W) int in [0, C).
    N, C, H, W = 2, 4, 16, 16
    key = jax.random.PRNGKey(0)
    k_out, k_teacher, k_a0, k_a1, k_lbl = jax.random.split(key, 5)

    outputs = {
        'out': jax.random.normal(k_out, (N, C, H, W), dtype=jnp.float32),
        'distill_teacher': jax.random.normal(k_teacher, (N, C, H, W),
                                             dtype=jnp.float32),
        'area_logits': [
            jax.random.normal(k_a0, (N, C, H, W), dtype=jnp.float32),
            jax.random.normal(k_a1, (N, C, H, W), dtype=jnp.float32),
        ],
    }
    labels = jax.random.randint(k_lbl, (N, H, W), 0, C, dtype=jnp.int32)

    # epoch=3 -> progress=0.6, so both the weighting and area-loss paths run.
    result = dynamic_ensemble_loss_no_dis(outputs, labels, epoch=3)
    jax.block_until_ready(result['loss'])

    # Light numerical sanity check against a pure-JAX reference.
    ref_fused = _ref_ce_mean(outputs['out'], labels)
    ref_global = _ref_ce_mean(outputs['distill_teacher'], labels)
    ref_area = (_ref_ce_mean(outputs['area_logits'][0], labels)
                + _ref_ce_mean(outputs['area_logits'][1], labels)) / 2.0
    assert jnp.allclose(result['loss_fused'], ref_fused, rtol=1e-3, atol=1e-3)
    assert jnp.allclose(result['loss_global'], ref_global, rtol=1e-3, atol=1e-3)
    assert jnp.allclose(result['loss_area'], ref_area, rtol=1e-3, atol=1e-3)

    print("KERNEL_OK")
</pallas_src>

<mosaic_0001>
module attributes {stable_mosaic.version = 11 : i64} {
  func.func @kernel(%arg0: i32, %arg1: i32, %arg2: memref<1x1x256xi32, #tpu.memory_space<vmem>>, %arg3: memref<1x4x256xf32, #tpu.memory_space<vmem>>, %arg4: memref<1x4x256xf32, #tpu.memory_space<vmem>>, %arg5: memref<1x4x256xf32, #tpu.memory_space<vmem>>, %arg6: memref<1x4x256xf32, #tpu.memory_space<vmem>>, %arg7: memref<1x1x256xf32, #tpu.memory_space<vmem>>, %arg8: memref<1x1x256xf32, #tpu.memory_space<vmem>>, %arg9: memref<1x1x256xf32, #tpu.memory_space<vmem>>, %arg10: memref<1x1x256xf32, #tpu.memory_space<vmem>>, %arg11: memref<1x1x256xf32, #tpu.memory_space<vmem>>) attributes {dimension_semantics = [#tpu.dimension_semantics<parallel>, #tpu.dimension_semantics<arbitrary>], iteration_bounds = array<i64: 2, 1>, scalar_prefetch = 0 : i64, scratch_operands = 0 : i64, tpu.core_type = #tpu.core_type<tc>, window_params = [{transform_indices = @transform_0, window_bounds = array<i64: 1, 1, 256>}, {transform_indices = @transform_1, window_bounds = array<i64: 1, 4, 256>}, {transform_indices = @transform_2, window_bounds = array<i64: 1, 4, 256>}, {transform_indices = @transform_3, window_bounds = array<i64: 1, 4, 256>}, {transform_indices = @transform_4, window_bounds = array<i64: 1, 4, 256>}, {transform_indices = @transform_5, window_bounds = array<i64: 1, 1, 256>}, {transform_indices = @transform_6, window_bounds = array<i64: 1, 1, 256>}, {transform_indices = @transform_7, window_bounds = array<i64: 1, 1, 256>}, {transform_indices = @transform_8, window_bounds = array<i64: 1, 1, 256>}, {transform_indices = @transform_9, window_bounds = array<i64: 1, 1, 256>}]} {
    %c0_i32 = arith.constant 0 : i32
    %0 = arith.cmpi eq, %arg1, %c0_i32 : i32
    %1 = arith.extui %0 : i1 to i32
    %c0_i32_0 = arith.constant 0 : i32
    %2 = arith.cmpi ne, %1, %c0_i32_0 : i32
    scf.if %2 {
      %cst_62 = arith.constant 0.000000e+00 : f32
      %121 = vector.broadcast %cst_62 : f32 to vector<1x1x256xf32>
      %c0_63 = arith.constant 0 : index
      %c0_64 = arith.constant 0 : index
      %c0_65 = arith.constant 0 : index
      %122 = vector.load %arg7[%c0_63, %c0_64, %c0_65] : memref<1x1x256xf32, #tpu.memory_space<vmem>>, vector<1x1x256xf32>
      tpu.vector_store %arg7[%c0_63, %c0_64, %c0_65], %121 {strides = array<i32>} : memref<1x1x256xf32, #tpu.memory_space<vmem>>, vector<1x1x256xf32>,
      %cst_66 = arith.constant 0.000000e+00 : f32
      %123 = vector.broadcast %cst_66 : f32 to vector<1x1x256xf32>
      %c0_67 = arith.constant 0 : index
      %c0_68 = arith.constant 0 : index
      %c0_69 = arith.constant 0 : index
      %124 = vector.load %arg8[%c0_67, %c0_68, %c0_69] : memref<1x1x256xf32, #tpu.memory_space<vmem>>, vector<1x1x256xf32>
      tpu.vector_store %arg8[%c0_67, %c0_68, %c0_69], %123 {strides = array<i32>} : memref<1x1x256xf32, #tpu.memory_space<vmem>>, vector<1x1x256xf32>,
      %cst_70 = arith.constant 0.000000e+00 : f32
      %125 = vector.broadcast %cst_70 : f32 to vector<1x1x256xf32>
      %c0_71 = arith.constant 0 : index
      %c0_72 = arith.constant 0 : index
      %c0_73 = arith.constant 0 : index
      %126 = vector.load %arg9[%c0_71, %c0_72, %c0_73] : memref<1x1x256xf32, #tpu.memory_space<vmem>>, vector<1x1x256xf32>
      tpu.vector_store %arg9[%c0_71, %c0_72, %c0_73], %125 {strides = array<i32>} : memref<1x1x256xf32, #tpu.memory_space<vmem>>, vector<1x1x256xf32>,
      %cst_74 = arith.constant 0.000000e+00 : f32
      %127 = vector.broadcast %cst_74 : f32 to vector<1x1x256xf32>
      %c0_75 = arith.constant 0 : index
      %c0_76 = arith.constant 0 : index
      %c0_77 = arith.constant 0 : index
      %128 = vector.load %arg10[%c0_75, %c0_76, %c0_77] : memref<1x1x256xf32, #tpu.memory_space<vmem>>, vector<1x1x256xf32>
      tpu.vector_store %arg10[%c0_75, %c0_76, %c0_77], %127 {strides = array<i32>} : memref<1x1x256xf32, #tpu.memory_space<vmem>>, vector<1x1x256xf32>,
      %cst_78 = arith.constant 0.000000e+00 : f32
      %129 = vector.broadcast %cst_78 : f32 to vector<1x1x256xf32>
      %c0_79 = arith.constant 0 : index
      %c0_80 = arith.constant 0 : index
      %c0_81 = arith.constant 0 : index
      %130 = vector.load %arg11[%c0_79, %c0_80, %c0_81] : memref<1x1x256xf32, #tpu.memory_space<vmem>>, vector<1x1x256xf32>
      tpu.vector_store %arg11[%c0_79, %c0_80, %c0_81], %129 {strides = array<i32>} : memref<1x1x256xf32, #tpu.memory_space<vmem>>, vector<1x1x256xf32>,
    } else {
    }
    %c0 = arith.constant 0 : index
    %c0_1 = arith.constant 0 : index
    %c0_2 = arith.constant 0 : index
    %3 = vector.load %arg2[%c0, %c0_1, %c0_2] : memref<1x1x256xi32, #tpu.memory_space<vmem>>, vector<1x1x256xi32>
    %4 = vector.shape_cast %3 : vector<1x1x256xi32> to vector<1x256xi32>
    %c256_i32 = arith.constant 256 : i32
    %5 = arith.muli %arg1, %c256_i32 : i32
    %6 = tpu.iota {dimensions = array<i32: 1>} : vector<1x256xi32>
    %7 = vector.broadcast %5 : i32 to vector<1x256xi32>
    %8 = arith.addi %7, %6 : vector<1x256xi32>
    %c256_i32_3 = arith.constant 256 : i32
    %9 = vector.broadcast %c256_i32_3 : i32 to vector<1x256xi32>
    %10 = arith.cmpi slt, %8, %9 : vector<1x256xi32>
    %c0_i32_4 = arith.constant 0 : i32
    %11 = vector.broadcast %c0_i32_4 : i32 to vector<1x256xi32>
    %12 = arith.cmpi sge, %4, %11 : vector<1x256xi32>
    %13 = arith.andi %10, %12 : vector<1x256xi1>
    %14 = arith.extui %13 : vector<1x256xi1> to vector<1x256xi32>
    %15 = arith.sitofp %14 : vector<1x256xi32> to vector<1x256xf32>
    %16 = tpu.iota {dimensions = array<i32: 0>} : vector<4x256xi32>
    %17 = vector.broadcast %4 : vector<1x256xi32> to vector<4x256xi32>
    %18 = arith.cmpi eq, %16, %17 : vector<4x256xi32>
    %19 = arith.extui %18 : vector<4x256xi1> to vector<4x256xi32>
    %20 = arith.sitofp %19 : vector<4x256xi32> to vector<4x256xf32>
    %c0_5 = arith.constant 0 : index
    %c0_6 = arith.constant 0 : index
    %c0_7 = arith.constant 0 : index
    %21 = vector.load %arg11[%c0_5, %c0_6, %c0_7] : memref<1x1x256xf32, #tpu.memory_space<vmem>>, vector<1x1x256xf32>
    %22 = vector.shape_cast %15 : vector<1x256xf32> to vector<1x1x256xf32>
    %23 = arith.addf %21, %22 : vector<1x1x256xf32>
    %c0_8 = arith.constant 0 : index
    %c0_9 = arith.constant 0 : index
    %c0_10 = arith.constant 0 : index
    %24 = vector.load %arg11[%c0_8, %c0_9, %c0_10] : memref<1x1x256xf32, #tpu.memory_space<vmem>>, vector<1x1x256xf32>
    tpu.vector_store %arg11[%c0_8, %c0_9, %c0_10], %23 {strides = array<i32>} : memref<1x1x256xf32, #tpu.memory_space<vmem>>, vector<1x1x256xf32>,
    %c0_11 = arith.constant 0 : index
    %c0_12 = arith.constant 0 : index
    %c0_13 = arith.constant 0 : index
    %25 = vector.load %arg3[%c0_11, %c0_12, %c0_13] : memref<1x4x256xf32, #tpu.memory_space<vmem>>, vector<1x4x256xf32>
    %26 = vector.shape_cast %25 : vector<1x4x256xf32> to vector<4x256xf32>
    %cst = arith.constant 0.000000e+00 : f32
    %27 = vector.shape_cast %10 : vector<1x256xi1> to vector<1x256xi1>
    %28 = vector.broadcast %27 : vector<1x256xi1> to vector<4x256xi1>
    %29 = vector.broadcast %cst : f32 to vector<4x256xf32>
    %30 = arith.select %28, %26, %29 : vector<4x256xi1>, vector<4x256xf32>
    %cst_14 = arith.constant dense<0xFF800000> : vector<256xf32>
    %31 = vector.multi_reduction <maximumf>, %30, %cst_14 [0] : vector<4x256xf32> to vector<256xf32>
    %32 = vector.shape_cast %31 : vector<256xf32> to vector<1x256xf32>
    %33 = vector.broadcast %32 : vector<1x256xf32> to vector<4x256xf32>
    %34 = arith.subf %30, %33 : vector<4x256xf32>
    %35 = math.exp %34 : vector<4x256xf32>
    %cst_15 = arith.constant dense<0.000000e+00> : vector<256xf32>
    %36 = vector.multi_reduction <add>, %35, %cst_15 [0] : vector<4x256xf32> to vector<256xf32>
    %37 = vector.shape_cast %36 : vector<256xf32> to vector<1x256xf32>
    %38 = math.log %37 : vector<1x256xf32>
    %39 = arith.addf %32, %38 : vector<1x256xf32>
    %40 = arith.mulf %30, %20 : vector<4x256xf32>
    %cst_16 = arith.constant dense<0.000000e+00> : vector<256xf32>
    %41 = vector.multi_reduction <add>, %40, %cst_16 [0] : vector<4x256xf32> to vector<256xf32>
    %42 = vector.shape_cast %41 : vector<256xf32> to vector<1x256xf32>
    %c0_17 = arith.constant 0 : index
    %c0_18 = arith.constant 0 : index
    %c0_19 = arith.constant 0 : index
    %43 = vector.load %arg7[%c0_17, %c0_18, %c0_19] : memref<1x1x256xf32, #tpu.memory_space<vmem>>, vector<1x1x256xf32>
    %44 = arith.subf %39, %42 : vector<1x256xf32>
    %45 = arith.mulf %44, %15 : vector<1x256xf32>
    %46 = vector.shape_cast %45 : vector<1x256xf32> to vector<1x1x256xf32>
    %47 = arith.addf %43, %46 : vector<1x1x256xf32>
    %c0_20 = arith.constant 0 : index
    %c0_21 = arith.constant 0 : index
    %c0_22 = arith.constant 0 : index
    %48 = vector.load %arg7[%c0_20, %c0_21, %c0_22] : memref<1x1x256xf32, #tpu.memory_space<vmem>>, vector<1x1x256xf32>
    tpu.vector_store %arg7[%c0_20, %c0_21, %c0_22], %47 {strides = array<i32>} : memref<1x1x256xf32, #tpu.memory_space<vmem>>, vector<1x1x256xf32>,
    %c0_23 = arith.constant 0 : index
    %c0_24 = arith.constant 0 : index
    %c0_25 = arith.constant 0 : index
    %49 = vector.load %arg4[%c0_23, %c0_24, %c0_25] : memref<1x4x256xf32, #tpu.memory_space<vmem>>, vector<1x4x256xf32>
    %50 = vector.shape_cast %49 : vector<1x4x256xf32> to vector<4x256xf32>
    %cst_26 = arith.constant 0.000000e+00 : f32
    %51 = vector.shape_cast %10 : vector<1x256xi1> to vector<1x256xi1>
    %52 = vector.broadcast %51 : vector<1x256xi1> to vector<4x256xi1>
    %53 = vector.broadcast %cst_26 : f32 to vector<4x256xf32>
    %54 = arith.select %52, %50, %53 : vector<4x256xi1>, vector<4x256xf32>
    %cst_27 = arith.constant dense<0xFF800000> : vector<256xf32>
    %55 = vector.multi_reduction <maximumf>, %54, %cst_27 [0] : vector<4x256xf32> to vector<256xf32>
    %56 = vector.shape_cast %55 : vector<256xf32> to vector<1x256xf32>
    %57 = vector.broadcast %56 : vector<1x256xf32> to vector<4x256xf32>
    %58 = arith.subf %54, %57 : vector<4x256xf32>
    %59 = math.exp %58 : vector<4x256xf32>
    %cst_28 = arith.constant dense<0.000000e+00> : vector<256xf32>
    %60 = vector.multi_reduction <add>, %59, %cst_28 [0] : vector<4x256xf32> to vector<256xf32>
    %61 = vector.shape_cast %60 : vector<256xf32> to vector<1x256xf32>
    %62 = math.log %61 : vector<1x256xf32>
    %63 = arith.addf %56, %62 : vector<1x256xf32>
    %64 = arith.mulf %54, %20 : vector<4x256xf32>
    %cst_29 = arith.constant dense<0.000000e+00> : vector<256xf32>
    %65 = vector.multi_reduction <add>, %64, %cst_29 [0] : vector<4x256xf32> to vector<256xf32>
    %66 = vector.shape_cast %65 : vector<256xf32> to vector<1x256xf32>
    %c0_30 = arith.constant 0 : index
    %c0_31 = arith.constant 0 : index
    %c0_32 = arith.constant 0 : index
    %67 = vector.load %arg8[%c0_30, %c0_31, %c0_32] : memref<1x1x256xf32, #tpu.memory_space<vmem>>, vector<1x1x256xf32>
    %68 = arith.subf %63, %66 : vector<1x256xf32>
    %69 = arith.mulf %68, %15 : vector<1x256xf32>
    %70 = vector.shape_cast %69 : vector<1x256xf32> to vector<1x1x256xf32>
    %71 = arith.addf %67, %70 : vector<1x1x256xf32>
    %c0_33 = arith.constant 0 : index
    %c0_34 = arith.constant 0 : index
    %c0_35 = arith.constant 0 : index
    %72 = vector.load %arg8[%c0_33, %c0_34, %c0_35] : memref<1x1x256xf32, #tpu.memory_space<vmem>>, vector<1x1x256xf32>
    tpu.vector_store %arg8[%c0_33, %c0_34, %c0_35], %71 {strides = array<i32>} : memref<1x1x256xf32, #tpu.memory_space<vmem>>, vector<1x1x256xf32>,
    %c0_36 = arith.constant 0 : index
    %c0_37 = arith.constant 0 : index
    %c0_38 = arith.constant 0 : index
    %73 = vector.load %arg5[%c0_36, %c0_37, %c0_38] : memref<1x4x256xf32, #tpu.memory_space<vmem>>, vector<1x4x256xf32>
    %74 = vector.shape_cast %73 : vector<1x4x256xf32> to vector<4x256xf32>
    %cst_39 = arith.constant 0.000000e+00 : f32
    %75 = vector.shape_cast %10 : vector<1x256xi1> to vector<1x256xi1>
    %76 = vector.broadcast %75 : vector<1x256xi1> to vector<4x256xi1>
    %77 = vector.broadcast %cst_39 : f32 to vector<4x256xf32>
    %78 = arith.select %76, %74, %77 : vector<4x256xi1>, vector<4x256xf32>
    %cst_40 = arith.constant dense<0xFF800000> : vector<256xf32>
    %79 = vector.multi_reduction <maximumf>, %78, %cst_40 [0] : vector<4x256xf32> to vector<256xf32>
    %80 = vector.shape_cast %79 : vector<256xf32> to vector<1x256xf32>
    %81 = vector.broadcast %80 : vector<1x256xf32> to vector<4x256xf32>
    %82 = arith.subf %78, %81 : vector<4x256xf32>
    %83 = math.exp %82 : vector<4x256xf32>
    %cst_41 = arith.constant dense<0.000000e+00> : vector<256xf32>
    %84 = vector.multi_reduction <add>, %83, %cst_41 [0] : vector<4x256xf32> to vector<256xf32>
    %85 = vector.shape_cast %84 : vector<256xf32> to vector<1x256xf32>
    %86 = math.log %85 : vector<1x256xf32>
    %87 = arith.addf %80, %86 : vector<1x256xf32>
    %88 = arith.mulf %78, %20 : vector<4x256xf32>
    %cst_42 = arith.constant dense<0.000000e+00> : vector<256xf32>
    %89 = vector.multi_reduction <add>, %88, %cst_42 [0] : vector<4x256xf32> to vector<256xf32>
    %90 = vector.shape_cast %89 : vector<256xf32> to vector<1x256xf32>
    %c0_43 = arith.constant 0 : index
    %c0_44 = arith.constant 0 : index
    %c0_45 = arith.constant 0 : index
    %91 = vector.load %arg9[%c0_43, %c0_44, %c0_45] : memref<1x1x256xf32, #tpu.memory_space<vmem>>, vector<1x1x256xf32>
    %92 = arith.subf %87, %90 : vector<1x256xf32>
    %93 = arith.mulf %92, %15 : vector<1x256xf32>
    %94 = vector.shape_cast %93 : vector<1x256xf32> to vector<1x1x256xf32>
    %95 = arith.addf %91, %94 : vector<1x1x256xf32>
    %c0_46 = arith.constant 0 : index
    %c0_47 = arith.constant 0 : index
    %c0_48 = arith.constant 0 : index
    %96 = vector.load %arg9[%c0_46, %c0_47, %c0_48] : memref<1x1x256xf32, #tpu.memory_space<vmem>>, vector<1x1x256xf32>
    tpu.vector_store %arg9[%c0_46, %c0_47, %c0_48], %95 {strides = array<i32>} : memref<1x1x256xf32, #tpu.memory_space<vmem>>, vector<1x1x256xf32>,
    %c0_49 = arith.constant 0 : index
    %c0_50 = arith.constant 0 : index
    %c0_51 = arith.constant 0 : index
    %97 = vector.load %arg6[%c0_49, %c0_50, %c0_51] : memref<1x4x256xf32, #tpu.memory_space<vmem>>, vector<1x4x256xf32>
    %98 = vector.shape_cast %97 : vector<1x4x256xf32> to vector<4x256xf32>
    %cst_52 = arith.constant 0.000000e+00 : f32
    %99 = vector.shape_cast %10 : vector<1x256xi1> to vector<1x256xi1>
    %100 = vector.broadcast %99 : vector<1x256xi1> to vector<4x256xi1>
    %101 = vector.broadcast %cst_52 : f32 to vector<4x256xf32>
    %102 = arith.select %100, %98, %101 : vector<4x256xi1>, vector<4x256xf32>
    %cst_53 = arith.constant dense<0xFF800000> : vector<256xf32>
    %103 = vector.multi_reduction <maximumf>, %102, %cst_53 [0] : vector<4x256xf32> to vector<256xf32>
    %104 = vector.shape_cast %103 : vector<256xf32> to vector<1x256xf32>
    %105 = vector.broadcast %104 : vector<1x256xf32> to vector<4x256xf32>
    %106 = arith.subf %102, %105 : vector<4x256xf32>
    %107 = math.exp %106 : vector<4x256xf32>
    %cst_54 = arith.constant dense<0.000000e+00> : vector<256xf32>
    %108 = vector.multi_reduction <add>, %107, %cst_54 [0] : vector<4x256xf32> to vector<256xf32>
    %109 = vector.shape_cast %108 : vector<256xf32> to vector<1x256xf32>
    %110 = math.log %109 : vector<1x256xf32>
    %111 = arith.addf %104, %110 : vector<1x256xf32>
    %112 = arith.mulf %102, %20 : vector<4x256xf32>
    %cst_55 = arith.constant dense<0.000000e+00> : vector<256xf32>
    %113 = vector.multi_reduction <add>, %112, %cst_55 [0] : vector<4x256xf32> to vector<256xf32>
    %114 = vector.shape_cast %113 : vector<256xf32> to vector<1x256xf32>
    %c0_56 = arith.constant 0 : index
    %c0_57 = arith.constant 0 : index
    %c0_58 = arith.constant 0 : index
    %115 = vector.load %arg10[%c0_56, %c0_57, %c0_58] : memref<1x1x256xf32, #tpu.memory_space<vmem>>, vector<1x1x256xf32>
    %116 = arith.subf %111, %114 : vector<1x256xf32>
    %117 = arith.mulf %116, %15 : vector<1x256xf32>
    %118 = vector.shape_cast %117 : vector<1x256xf32> to vector<1x1x256xf32>
    %119 = arith.addf %115, %118 : vector<1x1x256xf32>
    %c0_59 = arith.constant 0 : index
    %c0_60 = arith.constant 0 : index
    %c0_61 = arith.constant 0 : index
    %120 = vector.load %arg10[%c0_59, %c0_60, %c0_61] : memref<1x1x256xf32, #tpu.memory_space<vmem>>, vector<1x1x256xf32>
    tpu.vector_store %arg10[%c0_59, %c0_60, %c0_61], %119 {strides = array<i32>} : memref<1x1x256xf32, #tpu.memory_space<vmem>>, vector<1x1x256xf32>,
    return
  }
  func.func @transform_0(%arg0: i32, %arg1: i32) -> (i32, i32, i32) {
    %c0_i32 = arith.constant 0 : i32
    %c0_i32_0 = arith.constant 0 : i32
    return %arg0, %c0_i32, %arg1 : i32, i32, i32
  }
  func.func @transform_1(%arg0: i32, %arg1: i32) -> (i32, i32, i32) {
    %c0_i32 = arith.constant 0 : i32
    %c0_i32_0 = arith.constant 0 : i32
    return %arg0, %c0_i32, %arg1 : i32, i32, i32
  }
  func.func @transform_2(%arg0: i32, %arg1: i32) -> (i32, i32, i32) {
    %c0_i32 = arith.constant 0 : i32
    %c0_i32_0 = arith.constant 0 : i32
    return %arg0, %c0_i32, %arg1 : i32, i32, i32
  }
  func.func @transform_3(%arg0: i32, %arg1: i32) -> (i32, i32, i32) {
    %c0_i32 = arith.constant 0 : i32
    %c0_i32_0 = arith.constant 0 : i32
    return %arg0, %c0_i32, %arg1 : i32, i32, i32
  }
  func.func @transform_4(%arg0: i32, %arg1: i32) -> (i32, i32, i32) {
    %c0_i32 = arith.constant 0 : i32
    %c0_i32_0 = arith.constant 0 : i32
    return %arg0, %c0_i32, %arg1 : i32, i32, i32
  }
  func.func @transform_5(%arg0: i32, %arg1: i32) -> (i32, i32, i32) {
    %c0_i32 = arith.constant 0 : i32
    %c0_i32_0 = arith.constant 0 : i32
    %c0_i32_1 = arith.constant 0 : i32
    return %arg0, %c0_i32, %c0_i32_0 : i32, i32, i32
  }
  func.func @transform_6(%arg0: i32, %arg1: i32) -> (i32, i32, i32) {
    %c0_i32 = arith.constant 0 : i32
    %c0_i32_0 = arith.constant 0 : i32
    %c0_i32_1 = arith.constant 0 : i32
    return %arg0, %c0_i32, %c0_i32_0 : i32, i32, i32
  }
  func.func @transform_7(%arg0: i32, %arg1: i32) -> (i32, i32, i32) {
    %c0_i32 = arith.constant 0 : i32
    %c0_i32_0 = arith.constant 0 : i32
    %c0_i32_1 = arith.constant 0 : i32
    return %arg0, %c0_i32, %c0_i32_0 : i32, i32, i32
  }
  func.func @transform_8(%arg0: i32, %arg1: i32) -> (i32, i32, i32) {
    %c0_i32 = arith.constant 0 : i32
    %c0_i32_0 = arith.constant 0 : i32
    %c0_i32_1 = arith.constant 0 : i32
    return %arg0, %c0_i32, %c0_i32_0 : i32, i32, i32
  }
  func.func @transform_9(%arg0: i32, %arg1: i32) -> (i32, i32, i32) {
    %c0_i32 = arith.constant 0 : i32
    %c0_i32_0 = arith.constant 0 : i32
    %c0_i32_1 = arith.constant 0 : i32
    return %arg0, %c0_i32, %c0_i32_0 : i32, i32, i32
  }
}

</mosaic_0001>

<llo_original>
// kernel: tpu_custom_call.1
$region0: #{tpu_custom_call.1}
  #allocation0 [shape = 'u32[]', space=smem, size = 0x4, offset = 0x4, fixed_abs, tag = 'smem constant byte address 0x4 - core index']
  #allocation1 [shape = 'u32[144,128]{1,0:T(1,128)}', space=vmem, size = 0x12000, scoped, tag = 'internal scratch']
  %s0 = inlined_call_operand.hbm [shape: s32[2,1,256], index: 0, kind: input, shape index: {}]
  %s1 = inlined_call_operand.hbm [shape: f32[2,4,256], index: 1, kind: input, shape index: {}]
  %s2 = inlined_call_operand.hbm [shape: f32[2,4,256], index: 2, kind: input, shape index: {}]
  %s3 = inlined_call_operand.hbm [shape: f32[2,4,256], index: 3, kind: input, shape index: {}]
  %s4 = inlined_call_operand.hbm [shape: f32[2,4,256], index: 4, kind: input, shape index: {}]
  %s5 = inlined_call_operand.hbm [shape: f32[2,1,256], index: 5, kind: output, shape index: {0}]
  %s6 = inlined_call_operand.hbm [shape: f32[2,1,256], index: 6, kind: output, shape index: {1}]
  %s7 = inlined_call_operand.hbm [shape: f32[2,1,256], index: 7, kind: output, shape index: {2}]
  %s8 = inlined_call_operand.hbm [shape: f32[2,1,256], index: 8, kind: output, shape index: {3}]
  %s9 = inlined_call_operand.hbm [shape: f32[2,1,256], index: 9, kind: output, shape index: {4}]
  %10 = xla_tuple %s5, %s6, %s7, %s8, %s9
  %s11 = sld [smem:[#allocation0]]
  $region109: #{tpu_custom_call.1} parent=0
    _
  %s13 = ssub.s32 1, %s11
  %s14 = scalar_select 0, %s13, %s11
  $region1: #{tpu_custom_call.1} parent=0
    #allocation2 [shape = 'u8[2048]{0}', space=vmem, size = 0x800, scoped, tag = 'input window, operand 0']
    #allocation3 [shape = 's32[2]{0}', space=sflag, size = 0x8, scoped, tag = 'scoped memory for tpu_custom_call.1']
    #allocation4 [shape = 's32[2]{0}', space=sflag, size = 0x8, scoped, tag = 'scoped memory for tpu_custom_call.1']
    #allocation5 [shape = 'u8[8192]{0}', space=vmem, size = 0x2000, scoped, tag = 'input window, operand 1']
    #allocation6 [shape = 's32[2]{0}', space=sflag, size = 0x8, scoped, tag = 'scoped memory for tpu_custom_call.1']
    #allocation7 [shape = 'u8[8192]{0}', space=vmem, size = 0x2000, scoped, tag = 'input window, operand 2']
    #allocation8 [shape = 'u8[8192]{0}', space=vmem, size = 0x2000, scoped, tag = 'input window, operand 3']
    #allocation9 [shape = 's32[2]{0}', space=sflag, size = 0x8, scoped, tag = 'scoped memory for tpu_custom_call.1']
    #allocation10 [shape = 'u8[8192]{0}', space=vmem, size = 0x2000, scoped, tag = 'input window, operand 4']
    #allocation11 [shape = 'u8[2048]{0}', space=vmem, size = 0x800, scoped, tag = 'output window, operand 0']
    #allocation12 [shape = 'u8[2048]{0}', space=vmem, size = 0x800, scoped, tag = 'output window, operand 1']
    #allocation13 [shape = 's32[2]{0}', space=sflag, size = 0x8, scoped, tag = 'scoped memory for tpu_custom_call.1']
    #allocation14 [shape = 'u8[2048]{0}', space=vmem, size = 0x800, scoped, tag = 'output window, operand 2']
    #allocation15 [shape = 'u8[2048]{0}', space=vmem, size = 0x800, scoped, tag = 'output window, operand 3']
    #allocation16 [shape = 's32[2]{0}', space=sflag, size = 0x8, scoped, tag = 'scoped memory for tpu_custom_call.1']
    #allocation17 [shape = 'u8[2048]{0}', space=vmem, size = 0x800, scoped, tag = 'output window, operand 4']
    %15 = vsyncpa [#allocation3], 0
    %s16 = scalar_lea.sflag [#allocation3], 1
    %17 = vsyncpa %s16, 0
    %18 = vsyncpa [#allocation6], 0
    %s19 = scalar_lea.sflag [#allocation6], 1
    %20 = vsyncpa %s19, 0
    %21 = vsyncpa [#allocation9], 0
    %s22 = scalar_lea.sflag [#allocation9], 1
    %23 = vsyncpa %s22, 0
    %24 = vsyncpa [#allocation4], 0
    %s25 = scalar_lea.sflag [#allocation4], 1
    %26 = vsyncpa %s25, 0
    %27 = vsyncpa [#allocation13], 0
    %s28 = scalar_lea.sflag [#allocation13], 1
    %29 = vsyncpa %s28, 0
    %30 = vsyncpa [#allocation16], 0
    %s31 = scalar_lea.sflag [#allocation16], 1
    %32 = vsyncpa %s31, 0
    loop: start=0, step=1, limit=4
    $region2: #{tpu_custom_call.1} parent=1 // loop_pre_header
      _
    $region3: #{tpu_custom_call.1} parent=1 // loop_header
      %s34 = sphi 0, %s38
      %p35 = scmp.ge.s32.totalorder %s34, 4
      %s41 = sphi 0, %s53
      %s42 = sphi 0, %s49
      %s43 = sphi 0, %s41
      %s44 = sphi 0, %s42
      %s45 = sphi 0, %s43
      %s46 = sphi 0, %s44
      %s58 = sphi 0, %s60
      %s61 = sphi 0, %s58
      %s62 = sphi 0, %s61
      %s78 = sphi 0, %s62
      %s86 = sphi 0, %s88
      %s89 = sphi 0, %s86
      %s90 = sphi 0, %s89
      %s106 = sphi 0, %s90
      %s114 = sphi 0, %s116
      %s117 = sphi 0, %s114
      %s118 = sphi 0, %s117
      %s134 = sphi 0, %s118
      %s142 = sphi 0, %s144
      %s145 = sphi 0, %s142
      %s146 = sphi 0, %s145
      %s162 = sphi 0, %s146
      %s170 = sphi 0, %s172
      %s173 = sphi 0, %s170
      %s174 = sphi 0, %s173
      %s190 = sphi 0, %s174
      %s196 = sphi 0, %s198
      %s199 = sphi 0, %s196
      %s200 = sphi 0, %s199
      %s216 = sphi 0, %s200
      %s222 = sphi 0, %s224
      %s225 = sphi 0, %s222
      %s226 = sphi 0, %s225
      %s242 = sphi 0, %s226
      %s248 = sphi 0, %s250
      %s251 = sphi 0, %s248
      %s252 = sphi 0, %s251
      %s268 = sphi 0, %s252
      %s274 = sphi 0, %s276
      %s277 = sphi 0, %s274
      %s278 = sphi 0, %s277
      %s294 = sphi 0, %s278
      %s300 = sphi 0, %s302
      %s303 = sphi 0, %s300
      %s304 = sphi 0, %s303
      %s320 = sphi 0, %s304
    $region4: #{tpu_custom_call.1} parent=1 // loop_header_branch
      %37 = sbr.rel (%p35) target = $region8
    $region5: #{tpu_custom_call.1} parent=1 // loop_body
      %s39 = ssub.s32 %s34, 1
      %s40 = ssub.s32 %s34, 2
      %s47 = sadd.s32 1, %s42
      %p48 = scmp.ge.s32.totalorder %s47, 1
      %s49 = scalar_select %p48, 0, %s47
      %s50 = sadd.s32 1, %s41
      %s51 = scalar_select %p48, %s50, %s41
      %p52 = scmp.ge.s32.totalorder %s51, 2
      %s53 = scalar_select %p52, 0, %s51
      %s54 = ssub.s32 %s41, %s53
      %s55 = ssub.s32 %s42, %s49
      %s56 = sor.u32 %s54, %s55
      %p57 = scmp.eq.s32.totalorder %s56, 0
      %s59 = sadd.s32 %s58, 1
      %s60 = scalar_select %p57, %s58, %s59
      %p63 = pneg %p57
      %p64 = scmp.eq.s32.totalorder %s34, 1
      %p65 = por %p63, %p64
      %p66 = scmp.ne.s32.totalorder %s58, %s61
      %p67 = scmp.eq.s32.totalorder %s34, 0
      %p68 = por %p66, %p67
      %p69 = scmp.ne.s32.totalorder %s58, %s61
      %p70 = scmp.eq.s32.totalorder %s39, 1
      %p71 = por %p69, %p70
      %p72 = scmp.ne.s32.totalorder %s61, %s62
      %p73 = scmp.eq.s32.totalorder %s39, 0
      %p74 = por %p72, %p73
      %p75 = scmp.ne.s32.totalorder %s61, %s62
      %p76 = scmp.eq.s32.totalorder %s40, 1
      %p77 = por %p75, %p76
      %p79 = scmp.ne.s32.totalorder %s62, %s78
      %p80 = scmp.eq.s32.totalorder %s40, 0
      %p81 = por %p79, %p80
      %s82 = ssub.s32 %s41, %s53
      %s83 = ssub.s32 %s42, %s49
      %s84 = sor.u32 %s82, %s83
      %p85 = scmp.eq.s32.totalorder %s84, 0
      %s87 = sadd.s32 %s86, 1
      %s88 = scalar_select %p85, %s86, %s87
      %p91 = pneg %p85
      %p92 = scmp.eq.s32.totalorder %s34, 1
      %p93 = por %p91, %p92
      %p94 = scmp.ne.s32.totalorder %s86, %s89
      %p95 = scmp.eq.s32.totalorder %s34, 0
      %p96 = por %p94, %p95
      %p97 = scmp.ne.s32.totalorder %s86, %s89
      %p98 = scmp.eq.s32.totalorder %s39, 1
      %p99 = por %p97, %p98
      %p100 = scmp.ne.s32.totalorder %s89, %s90
      %p101 = scmp.eq.s32.totalorder %s39, 0
      %p102 = por %p100, %p101
      %p103 = scmp.ne.s32.totalorder %s89, %s90
      %p104 = scmp.eq.s32.totalorder %s40, 1
      %p105 = por %p103, %p104
      %p107 = scmp.ne.s32.totalorder %s90, %s106
      %p108 = scmp.eq.s32.totalorder %s40, 0
      %p109 = por %p107, %p108
      %s110 = ssub.s32 %s41, %s53
      %s111 = ssub.s32 %s42, %s49
      %s112 = sor.u32 %s110, %s111
      %p113 = scmp.eq.s32.totalorder %s112, 0
      %s115 = sadd.s32 %s114, 1
      %s116 = scalar_select %p113, %s114, %s115
      %p119 = pneg %p113
      %p120 = scmp.eq.s32.totalorder %s34, 1
      %p121 = por %p119, %p120
      %p122 = scmp.ne.s32.totalorder %s114, %s117
      %p123 = scmp.eq.s32.totalorder %s34, 0
      %p124 = por %p122, %p123
      %p125 = scmp.ne.s32.totalorder %s114, %s117
      %p126 = scmp.eq.s32.totalorder %s39, 1
      %p127 = por %p125, %p126
      %p128 = scmp.ne.s32.totalorder %s117, %s118
      %p129 = scmp.eq.s32.totalorder %s39, 0
      %p130 = por %p128, %p129
      %p131 = scmp.ne.s32.totalorder %s117, %s118
      %p132 = scmp.eq.s32.totalorder %s40, 1
      %p133 = por %p131, %p132
      %p135 = scmp.ne.s32.totalorder %s118, %s134
      %p136 = scmp.eq.s32.totalorder %s40, 0
      %p137 = por %p135, %p136
      %s138 = ssub.s32 %s41, %s53
      %s139 = ssub.s32 %s42, %s49
      %s140 = sor.u32 %s138, %s139
      %p141 = scmp.eq.s32.totalorder %s140, 0
      %s143 = sadd.s32 %s142, 1
      %s144 = scalar_select %p141, %s142, %s143
      %p147 = pneg %p141
      %p148 = scmp.eq.s32.totalorder %s34, 1
      %p149 = por %p147, %p148
      %p150 = scmp.ne.s32.totalorder %s142, %s145
      %p151 = scmp.eq.s32.totalorder %s34, 0
      %p152 = por %p150, %p151
      %p153 = scmp.ne.s32.totalorder %s142, %s145
      %p154 = scmp.eq.s32.totalorder %s39, 1
      %p155 = por %p153, %p154
      %p156 = scmp.ne.s32.totalorder %s145, %s146
      %p157 = scmp.eq.s32.totalorder %s39, 0
      %p158 = por %p156, %p157
      %p159 = scmp.ne.s32.totalorder %s145, %s146
      %p160 = scmp.eq.s32.totalorder %s40, 1
      %p161 = por %p159, %p160
      %p163 = scmp.ne.s32.totalorder %s146, %s162
      %p164 = scmp.eq.s32.totalorder %s40, 0
      %p165 = por %p163, %p164
      %s166 = ssub.s32 %s41, %s53
      %s167 = ssub.s32 %s42, %s49
      %s168 = sor.u32 %s166, %s167
      %p169 = scmp.eq.s32.totalorder %s168, 0
      %s171 = sadd.s32 %s170, 1
      %s172 = scalar_select %p169, %s170, %s171
      %p175 = pneg %p169
      %p176 = scmp.eq.s32.totalorder %s34, 1
      %p177 = por %p175, %p176
      %p178 = scmp.ne.s32.totalorder %s170, %s173
      %p179 = scmp.eq.s32.totalorder %s34, 0
      %p180 = por %p178, %p179
      %p181 = scmp.ne.s32.totalorder %s170, %s173
      %p182 = scmp.eq.s32.totalorder %s39, 1
      %p183 = por %p181, %p182
      %p184 = scmp.ne.s32.totalorder %s173, %s174
      %p185 = scmp.eq.s32.totalorder %s39, 0
      %p186 = por %p184, %p185
      %p187 = scmp.ne.s32.totalorder %s173, %s174
      %p188 = scmp.eq.s32.totalorder %s40, 1
      %p189 = por %p187, %p188
      %p191 = scmp.ne.s32.totalorder %s174, %s190
      %p192 = scmp.eq.s32.totalorder %s40, 0
      %p193 = por %p191, %p192
      %s194 = ssub.s32 %s41, %s53
      %p195 = scmp.eq.s32.totalorder %s194, 0
      %s197 = sadd.s32 %s196, 1
      %s198 = scalar_select %p195, %s196, %s197
      %p201 = pneg %p195
      %p202 = scmp.eq.s32.totalorder %s34, 1
      %p203 = por %p201, %p202
      %p204 = scmp.ne.s32.totalorder %s196, %s199
      %p205 = scmp.eq.s32.totalorder %s34, 0
      %p206 = por %p204, %p205
      %p207 = scmp.ne.s32.totalorder %s196, %s199
      %p208 = scmp.eq.s32.totalorder %s39, 1
      %p209 = por %p207, %p208
      %p210 = scmp.ne.s32.totalorder %s199, %s200
      %p211 = scmp.eq.s32.totalorder %s39, 0
      %p212 = por %p210, %p211
      %p213 = scmp.ne.s32.totalorder %s199, %s200
      %p214 = scmp.eq.s32.totalorder %s40, 1
      %p215 = por %p213, %p214
      %p217 = scmp.ne.s32.totalorder %s200, %s216
      %p218 = scmp.eq.s32.totalorder %s40, 0
      %p219 = por %p217, %p218
      %s220 = ssub.s32 %s41, %s53
      %p221 = scmp.eq.s32.totalorder %s220, 0
      %s223 = sadd.s32 %s222, 1
      %s224 = scalar_select %p221, %s222, %s223
      %p227 = pneg %p221
      %p228 = scmp.eq.s32.totalorder %s34, 1
      %p229 = por %p227, %p228
      %p230 = scmp.ne.s32.totalorder %s222, %s225
      %p231 = scmp.eq.s32.totalorder %s34, 0
      %p232 = por %p230, %p231
      %p233 = scmp.ne.s32.totalorder %s222, %s225
      %p234 = scmp.eq.s32.totalorder %s39, 1
      %p235 = por %p233, %p234
      %p236 = scmp.ne.s32.totalorder %s225, %s226
      %p237 = scmp.eq.s32.totalorder %s39, 0
      %p238 = por %p236, %p237
      %p239 = scmp.ne.s32.totalorder %s225, %s226
      %p240 = scmp.eq.s32.totalorder %s40, 1
      %p241 = por %p239, %p240
      %p243 = scmp.ne.s32.totalorder %s226, %s242
      %p244 = scmp.eq.s32.totalorder %s40, 0
      %p245 = por %p243, %p244
      %s246 = ssub.s32 %s41, %s53
      %p247 = scmp.eq.s32.totalorder %s246, 0
      %s249 = sadd.s32 %s248, 1
      %s250 = scalar_select %p247, %s248, %s249
      %p253 = pneg %p247
      %p254 = scmp.eq.s32.totalorder %s34, 1
      %p255 = por %p253, %p254
      %p256 = scmp.ne.s32.totalorder %s248, %s251
      %p257 = scmp.eq.s32.totalorder %s34, 0
      %p258 = por %p256, %p257
      %p259 = scmp.ne.s32.totalorder %s248, %s251
      %p260 = scmp.eq.s32.totalorder %s39, 1
      %p261 = por %p259, %p260
      %p262 = scmp.ne.s32.totalorder %s251, %s252
      %p263 = scmp.eq.s32.totalorder %s39, 0
      %p264 = por %p262, %p263
      %p265 = scmp.ne.s32.totalorder %s251, %s252
      %p266 = scmp.eq.s32.totalorder %s40, 1
      %p267 = por %p265, %p266
      %p269 = scmp.ne.s32.totalorder %s252, %s268
      %p270 = scmp.eq.s32.totalorder %s40, 0
      %p271 = por %p269, %p270
      %s272 = ssub.s32 %s41, %s53
      %p273 = scmp.eq.s32.totalorder %s272, 0
      %s275 = sadd.s32 %s274, 1
      %s276 = scalar_select %p273, %s274, %s275
      %p279 = pneg %p273
      %p280 = scmp.eq.s32.totalorder %s34, 1
      %p281 = por %p279, %p280
      %p282 = scmp.ne.s32.totalorder %s274, %s277
      %p283 = scmp.eq.s32.totalorder %s34, 0
      %p284 = por %p282, %p283
      %p285 = scmp.ne.s32.totalorder %s274, %s277
      %p286 = scmp.eq.s32.totalorder %s39, 1
      %p287 = por %p285, %p286
      %p288 = scmp.ne.s32.totalorder %s277, %s278
      %p289 = scmp.eq.s32.totalorder %s39, 0
      %p290 = por %p288, %p289
      %p291 = scmp.ne.s32.totalorder %s277, %s278
      %p292 = scmp.eq.s32.totalorder %s40, 1
      %p293 = por %p291, %p292
      %p295 = scmp.ne.s32.totalorder %s278, %s294
      %p296 = scmp.eq.s32.totalorder %s40, 0
      %p297 = por %p295, %p296
      %s298 = ssub.s32 %s41, %s53
      %p299 = scmp.eq.s32.totalorder %s298, 0
      %s301 = sadd.s32 %s300, 1
      %s302 = scalar_select %p299, %s300, %s301
      %p305 = pneg %p299
      %p306 = scmp.eq.s32.totalorder %s34, 1
      %p307 = por %p305, %p306
      %p308 = scmp.ne.s32.totalorder %s300, %s303
      %p309 = scmp.eq.s32.totalorder %s34, 0
      %p310 = por %p308, %p309
      %p311 = scmp.ne.s32.totalorder %s300, %s303
      %p312 = scmp.eq.s32.totalorder %s39, 1
      %p313 = por %p311, %p312
      %p314 = scmp.ne.s32.totalorder %s303, %s304
      %p315 = scmp.eq.s32.totalorder %s39, 0
      %p316 = por %p314, %p315
      %p317 = scmp.ne.s32.totalorder %s303, %s304
      %p318 = scmp.eq.s32.totalorder %s40, 1
      %p319 = por %p317, %p318
      %p321 = scmp.ne.s32.totalorder %s304, %s320
      %p322 = scmp.eq.s32.totalorder %s40, 0
      %p323 = por %p321, %p322
      %p324 = scmp.le.s32.totalorder 1, %s34
      %p325 = scmp.lt.s32.totalorder %s34, 3
      %p326 = pnand %p324, %p325
      %p327 = pneg %p326
      // Predicated region
      $region9: #{tpu_custom_call.1} parent=5 // pred_check
        _
      $region10: #{tpu_custom_call.1} parent=5 // pred_check_branch
        %329 = sbr.rel (%p326) target = $region12
      $region11: #{tpu_custom_call.1} parent=5 // pred_region
        %s330 = ssub.s32 %s34, 1
      $region12: #{tpu_custom_call.1} parent=5 // pred_fallthru
        _
      %p331 = scmp.lt.s32.totalorder %s34, 2
      // Predicated region
      $region13: #{tpu_custom_call.1} parent=5 // pred_check
        %p332 = pneg %p331
      $region14: #{tpu_custom_call.1} parent=5 // pred_check_branch
        %334 = sbr.rel (%p332) target = $region16
      $region15: #{tpu_custom_call.1} parent=5 // pred_region
        // Predicated region
        $region17: #{tpu_custom_call.1} parent=15 // pred_check
          %p335 = pneg %p68
        $region18: #{tpu_custom_call.1} parent=15 // pred_check_branch
          %337 = sbr.rel (%p335) target = $region20
        $region19: #{tpu_custom_call.1} parent=15 // pred_region
          %s338 = sand.u32 %s58, 1
          %s339 = scalar_lea.sflag [#allocation3], %s338
          %s340 = sand.u32 %s58, 1
          %s341 = smul.addr %s340, 2
          %s342 = scalar_lea.vmem [#allocation2], %s341
          %s343 = smul.u32 2, %s42
          %s345 = ssub.s32 32, 32
          %346 = vsyncadd %s339, %s345
          %s347 = smul.addr %s41, 2
          %s348 = sadd.s32 %s343, %s347
          %s349 = smul.addr %s348, 16
          %s350 = scalar_lea.hbm %s0, %s349
          %s352 = sshll.u32 %s342, 4
          %s353 = int_to_ptr.vmem [resolvable:$true] %s352
          %355 = dma.hbm_to_vmem [thread:$0]  %s350, 32, %s353, %s339
        $region20: #{tpu_custom_call.1} parent=15 // pred_fallthru
          _
        // Predicated region
        $region21: #{tpu_custom_call.1} parent=15 // pred_check
          %p356 = pneg %p96
        $region22: #{tpu_custom_call.1} parent=15 // pred_check_branch
          %358 = sbr.rel (%p356) target = $region24
        $region23: #{tpu_custom_call.1} parent=15 // pred_region
          %s359 = sand.u32 %s34, 1
          %s360 = scalar_lea.sflag [#allocation6], %s359
          %s361 = sand.u32 %s86, 1
          %s362 = smul.addr %s361, 8
          %s363 = scalar_lea.vmem [#allocation5], %s362
          %s364 = smul.u32 2, %s42
          %s366 = ssub.s32 128, 128
          %367 = vsyncadd %s360, %s366
          %s368 = smul.addr %s41, 2
          %s369 = sadd.s32 %s364, %s368
          %s370 = smul.addr %s369, 64
          %s371 = scalar_lea.hbm %s1, %s370
          %s373 = sshll.u32 %s363, 4
          %s374 = int_to_ptr.vmem [resolvable:$true] %s373
          %376 = dma.hbm_to_vmem [thread:$0]  %s371, 128, %s374, %s360
        $region24: #{tpu_custom_call.1} parent=15 // pred_fallthru
          _
        // Predicated region
        $region25: #{tpu_custom_call.1} parent=15 // pred_check
          %p377 = pneg %p124
        $region26: #{tpu_custom_call.1} parent=15 // pred_check_branch
          %379 = sbr.rel (%p377) target = $region28
        $region27: #{tpu_custom_call.1} parent=15 // pred_region
          %s380 = sand.u32 %s34, 1
          %s381 = scalar_lea.sflag [#allocation6], %s380
          %s382 = sand.u32 %s114, 1
          %s383 = smul.addr %s382, 8
          %s384 = scalar_lea.vmem [#allocation7], %s383
          %s385 = smul.u32 2, %s42
          %s387 = ssub.s32 128, 128
          %388 = vsyncadd %s381, %s387
          %s389 = smul.addr %s41, 2
          %s390 = sadd.s32 %s385, %s389
          %s391 = smul.addr %s390, 64
          %s392 = scalar_lea.hbm %s2, %s391
          %s394 = sshll.u32 %s384, 4
          %s395 = int_to_ptr.vmem [resolvable:$true] %s394
          %397 = dma.hbm_to_vmem [thread:$0]  %s392, 128, %s395, %s381
        $region28: #{tpu_custom_call.1} parent=15 // pred_fallthru
          _
        // Predicated region
        $region29: #{tpu_custom_call.1} parent=15 // pred_check
          %p398 = pneg %p152
        $region30: #{tpu_custom_call.1} parent=15 // pred_check_branch
          %400 = sbr.rel (%p398) target = $region32
        $region31: #{tpu_custom_call.1} parent=15 // pred_region
          %s401 = sand.u32 %s34, 1
          %s402 = scalar_lea.sflag [#allocation9], %s401
          %s403 = sand.u32 %s142, 1
          %s404 = smul.addr %s403, 8
          %s405 = scalar_lea.vmem [#allocation8], %s404
          %s406 = smul.u32 2, %s42
          %s408 = ssub.s32 128, 128
          %409 = vsyncadd %s402, %s408
          %s410 = smul.addr %s41, 2
          %s411 = sadd.s32 %s406, %s410
          %s412 = smul.addr %s411, 64
          %s413 = scalar_lea.hbm %s3, %s412
          %s415 = sshll.u32 %s405, 4
          %s416 = int_to_ptr.vmem [resolvable:$true] %s415
          %418 = dma.hbm_to_vmem [thread:$0]  %s413, 128, %s416, %s402
        $region32: #{tpu_custom_call.1} parent=15 // pred_fallthru
          _
        // Predicated region
        $region33: #{tpu_custom_call.1} parent=15 // pred_check
          %p419 = pneg %p180
        $region34: #{tpu_custom_call.1} parent=15 // pred_check_branch
          %421 = sbr.rel (%p419) target = $region36
        $region35: #{tpu_custom_call.1} parent=15 // pred_region
          %s422 = sand.u32 %s34, 1
          %s423 = scalar_lea.sflag [#allocation9], %s422
          %s424 = sand.u32 %s170, 1
          %s425 = smul.addr %s424, 8
          %s426 = scalar_lea.vmem [#allocation10], %s425
          %s427 = smul.u32 2, %s42
          %s429 = ssub.s32 128, 128
          %430 = vsyncadd %s423, %s429
          %s431 = smul.addr %s41, 2
          %s432 = sadd.s32 %s427, %s431
          %s433 = smul.addr %s432, 64
          %s434 = scalar_lea.hbm %s4, %s433
          %s436 = sshll.u32 %s426, 4
          %s437 = int_to_ptr.vmem [resolvable:$true] %s436
          %439 = dma.hbm_to_vmem [thread:$0]  %s434, 128, %s437, %s423
        $region36: #{tpu_custom_call.1} parent=15 // pred_fallthru
          _
      $region16: #{tpu_custom_call.1} parent=5 // pred_fallthru
        _
      %p440 = scmp.le.s32.totalorder 1, %s34
      %p441 = scmp.lt.s32.totalorder %s34, 3
      %p442 = pnand %p440, %p441
      %p443 = pneg %p442
      // Predicated region
      $region37: #{tpu_custom_call.1} parent=5 // pred_check
        _
      $region38: #{tpu_custom_call.1} parent=5 // pred_check_branch
        %445 = sbr.rel (%p442) target = $region40
      $region39: #{tpu_custom_call.1} parent=5 // pred_region
        %s446 = ssub.s32 %s34, 1
        %s447 = sand.u32 %s61, 1
        %s448 = scalar_lea.sflag [#allocation3], %s447
        %s449 = sand.u32 %s61, 1
        %s450 = smul.addr %s449, 2
        %s451 = scalar_lea.vmem [#allocation2], %s450
        // Predicated region
        $region41: #{tpu_custom_call.1} parent=39 // pred_check
          %p452 = pneg %p74
        $region42: #{tpu_custom_call.1} parent=39 // pred_check_branch
          %454 = sbr.rel (%p452) target = $region44
        $region43: #{tpu_custom_call.1} parent=39 // pred_region
          %455 = dma.done %s448, 32
        $region44: #{tpu_custom_call.1} parent=39 // pred_fallthru
          _
        %s456 = sand.u32 %s39, 1
        %s457 = scalar_lea.sflag [#allocation6], %s456
        %s458 = sand.u32 %s89, 1
        %s459 = smul.addr %s458, 8
        %s460 = scalar_lea.vmem [#allocation5], %s459
        // Predicated region
        $region45: #{tpu_custom_call.1} parent=39 // pred_check
          %p461 = pneg %p102
        $region46: #{tpu_custom_call.1} parent=39 // pred_check_branch
          %463 = sbr.rel (%p461) target = $region48
        $region47: #{tpu_custom_call.1} parent=39 // pred_region
          %464 = dma.done %s457, 128
        $region48: #{tpu_custom_call.1} parent=39 // pred_fallthru
          _
        %s465 = sand.u32 %s39, 1
        %s466 = scalar_lea.sflag [#allocation6], %s465
        %s467 = sand.u32 %s117, 1
        %s468 = smul.addr %s467, 8
        %s469 = scalar_lea.vmem [#allocation7], %s468
        // Predicated region
        $region49: #{tpu_custom_call.1} parent=39 // pred_check
          %p470 = pneg %p130
        $region50: #{tpu_custom_call.1} parent=39 // pred_check_branch
          %472 = sbr.rel (%p470) target = $region52
        $region51: #{tpu_custom_call.1} parent=39 // pred_region
          %473 = dma.done %s466, 128
        $region52: #{tpu_custom_call.1} parent=39 // pred_fallthru
          _
        %s474 = sand.u32 %s39, 1
        %s475 = scalar_lea.sflag [#allocation9], %s474
        %s476 = sand.u32 %s145, 1
        %s477 = smul.addr %s476, 8
        %s478 = scalar_lea.vmem [#allocation8], %s477
        // Predicated region
        $region53: #{tpu_custom_call.1} parent=39 // pred_check
          %p479 = pneg %p158
        $region54: #{tpu_custom_call.1} parent=39 // pred_check_branch
          %481 = sbr.rel (%p479) target = $region56
        $region55: #{tpu_custom_call.1} parent=39 // pred_region
          %482 = dma.done %s475, 128
        $region56: #{tpu_custom_call.1} parent=39 // pred_fallthru
          _
        %s483 = sand.u32 %s39, 1
        %s484 = scalar_lea.sflag [#allocation9], %s483
        %s485 = sand.u32 %s173, 1
        %s486 = smul.addr %s485, 8
        %s487 = scalar_lea.vmem [#allocation10], %s486
        // Predicated region
        $region57: #{tpu_custom_call.1} parent=39 // pred_check
          %p488 = pneg %p186
        $region58: #{tpu_custom_call.1} parent=39 // pred_check_branch
          %490 = sbr.rel (%p488) target = $region60
        $region59: #{tpu_custom_call.1} parent=39 // pred_region
          %491 = dma.done %s484, 128
        $region60: #{tpu_custom_call.1} parent=39 // pred_fallthru
          _
        %s492 = sand.u32 %s61, 1
        %s493 = scalar_lea.sflag [#allocation3], %s492
        %s494 = sand.u32 %s61, 1
        %s495 = smul.addr %s494, 2
        %s496 = scalar_lea.vmem [#allocation2], %s495
        %p497 = pneg %p74
        %p498 = pneg %p71
        %s499 = sand.u32 %s39, 1
        %s500 = scalar_lea.sflag [#allocation6], %s499
        %s501 = sand.u32 %s89, 1
        %s502 = smul.addr %s501, 8
        %s503 = scalar_lea.vmem [#allocation5], %s502
        %p504 = pneg %p102
        %p505 = pneg %p99
        %s506 = sand.u32 %s39, 1
        %s507 = scalar_lea.sflag [#allocation6], %s506
        %s508 = sand.u32 %s117, 1
        %s509 = smul.addr %s508, 8
        %s510 = scalar_lea.vmem [#allocation7], %s509
        %p511 = pneg %p130
        %p512 = pneg %p127
        %s513 = sand.u32 %s39, 1
        %s514 = scalar_lea.sflag [#allocation9], %s513
        %s515 = sand.u32 %s145, 1
        %s516 = smul.addr %s515, 8
        %s517 = scalar_lea.vmem [#allocation8], %s516
        %p518 = pneg %p158
        %p519 = pneg %p155
        %s520 = sand.u32 %s39, 1
        %s521 = scalar_lea.sflag [#allocation9], %s520
        %s522 = sand.u32 %s173, 1
        %s523 = smul.addr %s522, 8
        %s524 = scalar_lea.vmem [#allocation10], %s523
        %p525 = pneg %p186
        %p526 = pneg %p183
        %p527 = pneg %p212
        %p528 = pneg %p209
        %s529 = sand.u32 %s199, 1
        %s530 = scalar_lea.sflag [#allocation4], %s529
        %s531 = sand.u32 %s199, 1
        %s532 = smul.addr %s531, 2
        %s533 = scalar_lea.vmem [#allocation11], %s532
        %p534 = pneg %p238
        %p535 = pneg %p235
        %s536 = sand.u32 %s39, 1
        %s537 = scalar_lea.sflag [#allocation13], %s536
        %s538 = sand.u32 %s225, 1
        %s539 = smul.addr %s538, 2
        %s540 = scalar_lea.vmem [#allocation12], %s539
        %p541 = pneg %p264
        %p542 = pneg %p261
        %s543 = sand.u32 %s39, 1
        %s544 = scalar_lea.sflag [#allocation13], %s543
        %s545 = sand.u32 %s251, 1
        %s546 = smul.addr %s545, 2
        %s547 = scalar_lea.vmem [#allocation14], %s546
        %p548 = pneg %p290
        %p549 = pneg %p287
        %s550 = sand.u32 %s39, 1
        %s551 = scalar_lea.sflag [#allocation16], %s550
        %s552 = sand.u32 %s277, 1
        %s553 = smul.addr %s552, 2
        %s554 = scalar_lea.vmem [#allocation15], %s553
        %p555 = pneg %p316
        %p556 = pneg %p313
        %s557 = sand.u32 %s39, 1
        %s558 = scalar_lea.sflag [#allocation16], %s557
        %s559 = sand.u32 %s303, 1
        %s560 = smul.addr %s559, 2
        %s561 = scalar_lea.vmem [#allocation17], %s560
        %s562 = smul.u32 2, %s44
        %s563 = smul.u32 2, %s44
        %s564 = smul.u32 2, %s44
        %s565 = smul.u32 2, %s44
        %s566 = smul.u32 2, %s44
        %p567 = scmp.eq.s32.totalorder %s44, 0
        // Predicated region
        $region61: #{tpu_custom_call.1} parent=39 // pred_check
          %p568 = pneg %p567
        $region62: #{tpu_custom_call.1} parent=39 // pred_check_branch
          %570 = sbr.rel (%p568) target = $region64
        $region63: #{tpu_custom_call.1} parent=39 // pred_region
          %v571 = vlaneseq
          %vm572 = vcmp.ge.s32.totalorder %v571, 0
          %vm573 = vcmp.lt.s32.totalorder %v571, 256
          %vm574 = vmand %vm572, %vm573
          %575 = vst.msk [vmem:[%s533] sm:$0x3] %vm574, 0.0
          %576 = vst.msk [vmem:[%s540] sm:$0x3] %vm574, 0.0
          %577 = vst.msk [vmem:[%s547] sm:$0x3] %vm574, 0.0
          %578 = vst.msk [vmem:[%s554] sm:$0x3] %vm574, 0.0
          %579 = vst.msk [vmem:[%s561] sm:$0x3] %vm574, 0.0
        $region64: #{tpu_custom_call.1} parent=39 // pred_fallthru
          _
        %v580 = vld [vmem:[%s451] sm:$0x3]
        %s581 = smul.u32 %s44, 256
        %v582 = vlaneseq
        %v583 = vand.u32 %v582, 127
        %v584 = vadd.s32 %v583, 128
        %v585 = vstv %s581
        %v586 = vadd.s32 %v585, %v583
        %v587 = vadd.s32 %v585, %v584
        %vm588 = vcmp.lt.s32.totalorder %v586, 256
        %vm589 = vcmp.lt.s32.totalorder %v587, 256
        %vm590 = vcmp.ge.s32.totalorder %v580, 0
        %v591 = vsel %vm590, 1, 0
        %v592 = vlaneseq
        %v593 = vshrl.u32 %v592, 7
        %v594 = vsub.s32 0, %v593
        %v595 = vrot.slane %v591, %v594
        %v596 = vlaneseq
        %v597 = vshrl.u32 %v596, 7
        %v598 = vsub.s32 1, %v597
        %v599 = vrot.slane %v591, %v598
        %vm600 = vcmp.ne.s32.totalorder %v595, 0
        %vm601 = vcmp.ne.s32.totalorder %v599, 0
        %vm602 = vmand %vm588, %vm600
        %vm603 = vmand %vm589, %vm601
        %v604 = vsel %vm602, 1, 0
        %v605 = vsel %vm603, 1, 0
        %v606 = vcvt.s32.f32 %v604
        %v607 = vcvt.s32.f32 %v605
        %v608 = vlaneseq
        %v609 = vshrl.u32 %v608, 7
        %v610 = vlaneseq
        %v611 = vshrl.u32 %v610, 7
        %v612 = vsub.s32 0, %v611
        %v613 = vrot.slane %v580, %v612
        %v614 = vlaneseq
        %v615 = vshrl.u32 %v614, 7
        %v616 = vsub.s32 1, %v615
        %v617 = vrot.slane %v580, %v616
        %vm618 = vcmp.eq.s32.totalorder %v609, %v613
        %vm619 = vcmp.eq.s32.totalorder %v609, %v617
        %v620 = vsel %vm618, 1, 0
        %v621 = vsel %vm619, 1, 0
        %v622 = vcvt.s32.f32 %v620
        %v623 = vcvt.s32.f32 %v621
        %v624 = vld [vmem:[%s561] sm:$0x3]
        %v627 = vcombine.low %v606, %v607
        %v629 = vunpack.c.l.s4 1966171168
        %v630 = vunpack.c.0.s8 %v629
        %v631 = vlaneseq
        %v632 = vshrl.u32 %v631, 7
        %v633 = vsub.s32 %v630, %v632
        %v634 = vrot.slane %v627, %v633
        %v636 = vunpack.c.l.s4 1966171168
        %v637 = vunpack.c.0.s8 %v636
        %v638 = vlaneseq
        %v639 = vshrl.u32 %v638, 7
        %v640 = vsub.s32 %v637, %v639
        %v641 = vrot.slane %v634, %v640
        %v643 = vadd.f32 %v624, %v641
        %v644 = vlaneseq
        %vm645 = vcmp.ge.s32.totalorder %v644, 0
        %vm646 = vcmp.lt.s32.totalorder %v644, 256
        %vm647 = vmand %vm645, %vm646
        %648 = vst.msk [vmem:[%s561] sm:$0x3] %vm647, %v643
        %v649 = vld [vmem:[%s460] sm:$0xff]
        %v650 = vsel %vm588, 1, 0
        %v651 = vsel %vm589, 1, 0
        %vm652 = vcmp.eq.s32.totalorder %v650, 1
        %vm653 = vcmp.eq.s32.totalorder %v651, 1
        %v655 = vcombine.high %v649, %v649
        %v657 = vsel %vm652, %v649, 0.0
        %v658 = vsel %vm653, %v655, 0.0
        %vm659 = vcmask 1043456
        %v660 = vsel %vm659, %v657, -inf
        %v661 = vrot.slane %v660, 4
        %v662 = vmax.f32 %v660, %v661
        %v663 = vrot.slane %v662, 2
        %v664 = vmax.f32 %v662, %v663
        %v665 = vrot.slane %v664, 1
        %v666 = vmax.f32 %v664, %v665
        %v667 = vsel %vm659, %v658, -inf
        %v668 = vrot.slane %v667, 4
        %v669 = vmax.f32 %v667, %v668
        %v670 = vrot.slane %v669, 2
        %v671 = vmax.f32 %v669, %v670
        %v672 = vrot.slane %v671, 1
        %v673 = vmax.f32 %v671, %v672
        %v674 = vsub.f32 %v657, %v666
        %v675 = vsub.f32 %v658, %v673
        %v676 = vmul.f32 %v674, 1.442695
        %v677 = vpow.pop %v676
        %v678 = vmul.f32 %v675, 1.442695
        %v679 = vpow.pop %v678
        %v680 = vsel %vm659, %v677, 0.0
        %v681 = vrot.slane %v680, 4
        %v682 = vadd.f32 %v680, %v681
        %v683 = vrot.slane %v682, 2
        %v684 = vadd.f32 %v682, %v683
        %v685 = vrot.slane %v684, 1
        %v686 = vadd.f32 %v684, %v685
        %v687 = vsel %vm659, %v679, 0.0
        %v688 = vrot.slane %v687, 4
        %v689 = vadd.f32 %v687, %v688
        %v690 = vrot.slane %v689, 2
        %v691 = vadd.f32 %v689, %v690
        %v692 = vrot.slane %v691, 1
        %v693 = vadd.f32 %v691, %v692
        %v694 = vlog2.pop %v686
        %v695 = vmul.f32 %v694, 0.6931472
        %v696 = vlog2.pop %v693
        %v697 = vmul.f32 %v696, 0.6931472
        %v698 = vadd.f32 %v666, %v695
        %v699 = vadd.f32 %v673, %v697
        %v700 = vmul.f32 %v657, %v622
        %v701 = vmul.f32 %v658, %v623
        %v702 = vsel %vm659, %v700, 0.0
        %v703 = vrot.slane %v702, 4
        %v704 = vadd.f32 %v702, %v703
        %v705 = vrot.slane %v704, 2
        %v706 = vadd.f32 %v704, %v705
        %v707 = vrot.slane %v706, 1
        %v708 = vadd.f32 %v706, %v707
        %v709 = vsel %vm659, %v701, 0.0
        %v710 = vrot.slane %v709, 4
        %v711 = vadd.f32 %v709, %v710
        %v712 = vrot.slane %v711, 2
        %v713 = vadd.f32 %v711, %v712
        %v714 = vrot.slane %v713, 1
        %v715 = vadd.f32 %v713, %v714
        %v716 = vld [vmem:[%s533] sm:$0x3]
        %v717 = vsub.f32 %v698, %v708
        %v718 = vsub.f32 %v699, %v715
        %v719 = vmul.f32 %v717, %v606
        %v720 = vmul.f32 %v718, %v607
        %v723 = vcombine.low %v719, %v720
        %v725 = vunpack.c.l.s4 1966171168
        %v726 = vunpack.c.0.s8 %v725
        %v727 = vlaneseq
        %v728 = vshrl.u32 %v727, 7
        %v729 = vsub.s32 %v726, %v728
        %v730 = vrot.slane %v723, %v729
        %v732 = vunpack.c.l.s4 1966171168
        %v733 = vunpack.c.0.s8 %v732
        %v734 = vlaneseq
        %v735 = vshrl.u32 %v734, 7
        %v736 = vsub.s32 %v733, %v735
        %v737 = vrot.slane %v730, %v736
        %v739 = vadd.f32 %v716, %v737
        %740 = vst.msk [vmem:[%s533] sm:$0x3] %vm647, %v739
        %v741 = vld [vmem:[%s469] sm:$0xff]
        %v743 = vcombine.high %v741, %v741
        %v745 = vsel %vm652, %v741, 0.0
        %v746 = vsel %vm653, %v743, 0.0
        %v747 = vsel %vm659, %v745, -inf
        %v748 = vrot.slane %v747, 4
        %v749 = vmax.f32 %v747, %v748
        %v750 = vrot.slane %v749, 2
        %v751 = vmax.f32 %v749, %v750
        %v752 = vrot.slane %v751, 1
        %v753 = vmax.f32 %v751, %v752
        %v754 = vsel %vm659, %v746, -inf
        %v755 = vrot.slane %v754, 4
        %v756 = vmax.f32 %v754, %v755
        %v757 = vrot.slane %v756, 2
        %v758 = vmax.f32 %v756, %v757
        %v759 = vrot.slane %v758, 1
        %v760 = vmax.f32 %v758, %v759
        %v761 = vsub.f32 %v745, %v753
        %v762 = vsub.f32 %v746, %v760
        %v763 = vmul.f32 %v761, 1.442695
        %v764 = vpow.pop %v763
        %v765 = vmul.f32 %v762, 1.442695
        %v766 = vpow.pop %v765
        %v767 = vsel %vm659, %v764, 0.0
        %v768 = vrot.slane %v767, 4
        %v769 = vadd.f32 %v767, %v768
        %v770 = vrot.slane %v769, 2
        %v771 = vadd.f32 %v769, %v770
        %v772 = vrot.slane %v771, 1
        %v773 = vadd.f32 %v771, %v772
        %v774 = vsel %vm659, %v766, 0.0
        %v775 = vrot.slane %v774, 4
        %v776 = vadd.f32 %v774, %v775
        %v777 = vrot.slane %v776, 2
        %v778 = vadd.f32 %v776, %v777
        %v779 = vrot.slane %v778, 1
        %v780 = vadd.f32 %v778, %v779
        %v781 = vlog2.pop %v773
        %v782 = vmul.f32 %v781, 0.6931472
        %v783 = vlog2.pop %v780
        %v784 = vmul.f32 %v783, 0.6931472
        %v785 = vadd.f32 %v753, %v782
        %v786 = vadd.f32 %v760, %v784
        %v787 = vmul.f32 %v745, %v622
        %v788 = vmul.f32 %v746, %v623
        %v789 = vsel %vm659, %v787, 0.0
        %v790 = vrot.slane %v789, 4
        %v791 = vadd.f32 %v789, %v790
        %v792 = vrot.slane %v791, 2
        %v793 = vadd.f32 %v791, %v792
        %v794 = vrot.slane %v793, 1
        %v795 = vadd.f32 %v793, %v794
        %v796 = vsel %vm659, %v788, 0.0
        %v797 = vrot.slane %v796, 4
        %v798 = vadd.f32 %v796, %v797
        %v799 = vrot.slane %v798, 2
        %v800 = vadd.f32 %v798, %v799
        %v801 = vrot.slane %v800, 1
        %v802 = vadd.f32 %v800, %v801
        %v803 = vld [vmem:[%s540] sm:$0x3]
        %v804 = vsub.f32 %v785, %v795
        %v805 = vsub.f32 %v786, %v802
        %v806 = vmul.f32 %v804, %v606
        %v807 = vmul.f32 %v805, %v607
        %v810 = vcombine.low %v806, %v807
        %v812 = vunpack.c.l.s4 1966171168
        %v813 = vunpack.c.0.s8 %v812
        %v814 = vlaneseq
        %v815 = vshrl.u32 %v814, 7
        %v816 = vsub.s32 %v813, %v815
        %v817 = vrot.slane %v810, %v816
        %v819 = vunpack.c.l.s4 1966171168
        %v820 = vunpack.c.0.s8 %v819
        %v821 = vlaneseq
        %v822 = vshrl.u32 %v821, 7
        %v823 = vsub.s32 %v820, %v822
        %v824 = vrot.slane %v817, %v823
        %v826 = vadd.f32 %v803, %v824
        %827 = vst.msk [vmem:[%s540] sm:$0x3] %vm647, %v826
        %v828 = vld [vmem:[%s478] sm:$0xff]
        %v830 = vcombine.high %v828, %v828
        %v832 = vsel %vm652, %v828, 0.0
        %v833 = vsel %vm653, %v830, 0.0
        %v834 = vsel %vm659, %v832, -inf
        %v835 = vrot.slane %v834, 4
        %v836 = vmax.f32 %v834, %v835
        %v837 = vrot.slane %v836, 2
        %v838 = vmax.f32 %v836, %v837
        %v839 = vrot.slane %v838, 1
        %v840 = vmax.f32 %v838, %v839
        %v841 = vsel %vm659, %v833, -inf
        %v842 = vrot.slane %v841, 4
        %v843 = vmax.f32 %v841, %v842
        %v844 = vrot.slane %v843, 2
        %v845 = vmax.f32 %v843, %v844
        %v846 = vrot.slane %v845, 1
        %v847 = vmax.f32 %v845, %v846
        %v848 = vsub.f32 %v832, %v840
        %v849 = vsub.f32 %v833, %v847
        %v850 = vmul.f32 %v848, 1.442695
        %v851 = vpow.pop %v850
        %v852 = vmul.f32 %v849, 1.442695
        %v853 = vpow.pop %v852
        %v854 = vsel %vm659, %v851, 0.0
        %v855 = vrot.slane %v854, 4
        %v856 = vadd.f32 %v854, %v855
        %v857 = vrot.slane %v856, 2
        %v858 = vadd.f32 %v856, %v857
        %v859 = vrot.slane %v858, 1
        %v860 = vadd.f32 %v858, %v859
        %v861 = vsel %vm659, %v853, 0.0
        %v862 = vrot.slane %v861, 4
        %v863 = vadd.f32 %v861, %v862
        %v864 = vrot.slane %v863, 2
        %v865 = vadd.f32 %v863, %v864
        %v866 = vrot.slane %v865, 1
        %v867 = vadd.f32 %v865, %v866
        %v868 = vlog2.pop %v860
        %v869 = vmul.f32 %v868, 0.6931472
        %v870 = vlog2.pop %v867
        %v871 = vmul.f32 %v870, 0.6931472
        %v872 = vadd.f32 %v840, %v869
        %v873 = vadd.f32 %v847, %v871
        %v874 = vmul.f32 %v832, %v622
        %v875 = vmul.f32 %v833, %v623
        %v876 = vsel %vm659, %v874, 0.0
        %v877 = vrot.slane %v876, 4
        %v878 = vadd.f32 %v876, %v877
        %v879 = vrot.slane %v878, 2
        %v880 = vadd.f32 %v878, %v879
        %v881 = vrot.slane %v880, 1
        %v882 = vadd.f32 %v880, %v881
        %v883 = vsel %vm659, %v875, 0.0
        %v884 = vrot.slane %v883, 4
        %v885 = vadd.f32 %v883, %v884
        %v886 = vrot.slane %v885, 2
        %v887 = vadd.f32 %v885, %v886
        %v888 = vrot.slane %v887, 1
        %v889 = vadd.f32 %v887, %v888
        %v890 = vld [vmem:[%s547] sm:$0x3]
        %v891 = vsub.f32 %v872, %v882
        %v892 = vsub.f32 %v873, %v889
        %v893 = vmul.f32 %v891, %v606
        %v894 = vmul.f32 %v892, %v607
        %v897 = vcombine.low %v893, %v894
        %v899 = vunpack.c.l.s4 1966171168
        %v900 = vunpack.c.0.s8 %v899
        %v901 = vlaneseq
        %v902 = vshrl.u32 %v901, 7
        %v903 = vsub.s32 %v900, %v902
        %v904 = vrot.slane %v897, %v903
        %v906 = vunpack.c.l.s4 1966171168
        %v907 = vunpack.c.0.s8 %v906
        %v908 = vlaneseq
        %v909 = vshrl.u32 %v908, 7
        %v910 = vsub.s32 %v907, %v909
        %v911 = vrot.slane %v904, %v910
        %v913 = vadd.f32 %v890, %v911
        %914 = vst.msk [vmem:[%s547] sm:$0x3] %vm647, %v913
        %v915 = vld [vmem:[%s487] sm:$0xff]
        %v917 = vcombine.high %v915, %v915
        %v919 = vsel %vm652, %v915, 0.0
        %v920 = vsel %vm653, %v917, 0.0
        %v921 = vsel %vm659, %v919, -inf
        %v922 = vrot.slane %v921, 4
        %v923 = vmax.f32 %v921, %v922
        %v924 = vrot.slane %v923, 2
        %v925 = vmax.f32 %v923, %v924
        %v926 = vrot.slane %v925, 1
        %v927 = vmax.f32 %v925, %v926
        %v928 = vsel %vm659, %v920, -inf
        %v929 = vrot.slane %v928, 4
        %v930 = vmax.f32 %v928, %v929
        %v931 = vrot.slane %v930, 2
        %v932 = vmax.f32 %v930, %v931
        %v933 = vrot.slane %v932, 1
        %v934 = vmax.f32 %v932, %v933
        %v935 = vsub.f32 %v919, %v927
        %v936 = vsub.f32 %v920, %v934
        %v937 = vmul.f32 %v935, 1.442695
        %v938 = vpow.pop %v937
        %v939 = vmul.f32 %v936, 1.442695
        %v940 = vpow.pop %v939
        %v941 = vsel %vm659, %v938, 0.0
        %v942 = vrot.slane %v941, 4
        %v943 = vadd.f32 %v941, %v942
        %v944 = vrot.slane %v943, 2
        %v945 = vadd.f32 %v943, %v944
        %v946 = vrot.slane %v945, 1
        %v947 = vadd.f32 %v945, %v946
        %v948 = vsel %vm659, %v940, 0.0
        %v949 = vrot.slane %v948, 4
        %v950 = vadd.f32 %v948, %v949
        %v951 = vrot.slane %v950, 2
        %v952 = vadd.f32 %v950, %v951
        %v953 = vrot.slane %v952, 1
        %v954 = vadd.f32 %v952, %v953
        %v955 = vlog2.pop %v947
        %v956 = vmul.f32 %v955, 0.6931472
        %v957 = vlog2.pop %v954
        %v958 = vmul.f32 %v957, 0.6931472
        %v959 = vadd.f32 %v927, %v956
        %v960 = vadd.f32 %v934, %v958
        %v961 = vmul.f32 %v919, %v622
        %v962 = vmul.f32 %v920, %v623
        %v963 = vsel %vm659, %v961, 0.0
        %v964 = vrot.slane %v963, 4
        %v965 = vadd.f32 %v963, %v964
        %v966 = vrot.slane %v965, 2
        %v967 = vadd.f32 %v965, %v966
        %v968 = vrot.slane %v967, 1
        %v969 = vadd.f32 %v967, %v968
        %v970 = vsel %vm659, %v962, 0.0
        %v971 = vrot.slane %v970, 4
        %v972 = vadd.f32 %v970, %v971
        %v973 = vrot.slane %v972, 2
        %v974 = vadd.f32 %v972, %v973
        %v975 = vrot.slane %v974, 1
        %v976 = vadd.f32 %v974, %v975
        %v977 = vld [vmem:[%s554] sm:$0x3]
        %v978 = vsub.f32 %v959, %v969
        %v979 = vsub.f32 %v960, %v976
        %v980 = vmul.f32 %v978, %v606
        %v981 = vmul.f32 %v979, %v607
        %v984 = vcombine.low %v980, %v981
        %v986 = vunpack.c.l.s4 1966171168
        %v987 = vunpack.c.0.s8 %v986
        %v988 = vlaneseq
        %v989 = vshrl.u32 %v988, 7
        %v990 = vsub.s32 %v987, %v989
        %v991 = vrot.slane %v984, %v990
        %v993 = vunpack.c.l.s4 1966171168
        %v994 = vunpack.c.0.s8 %v993
        %v995 = vlaneseq
        %v996 = vshrl.u32 %v995, 7
        %v997 = vsub.s32 %v994, %v996
        %v998 = vrot.slane %v991, %v997
        %v1000 = vadd.f32 %v977, %v998
        %1001 = vst.msk [vmem:[%s554] sm:$0x3] %vm647, %v1000
        %s1002 = sand.u32 %s199, 1
        %s1003 = scalar_lea.sflag [#allocation4], %s1002
        %s1004 = sand.u32 %s199, 1
        %s1005 = smul.addr %s1004, 2
        %s1006 = scalar_lea.vmem [#allocation11], %s1005
        %s1007 = sand.u32 %s39, 1
        %s1008 = scalar_lea.sflag [#allocation13], %s1007
        %s1009 = sand.u32 %s225, 1
        %s1010 = smul.addr %s1009, 2
        %s1011 = scalar_lea.vmem [#allocation12], %s1010
        %s1012 = sand.u32 %s39, 1
        %s1013 = scalar_lea.sflag [#allocation13], %s1012
        %s1014 = sand.u32 %s251, 1
        %s1015 = smul.addr %s1014, 2
        %s1016 = scalar_lea.vmem [#allocation14], %s1015
        %s1017 = sand.u32 %s39, 1
        %s1018 = scalar_lea.sflag [#allocation16], %s1017
        %s1019 = sand.u32 %s277, 1
        %s1020 = smul.addr %s1019, 2
        %s1021 = scalar_lea.vmem [#allocation15], %s1020
        %s1022 = sand.u32 %s39, 1
        %s1023 = scalar_lea.sflag [#allocation16], %s1022
        %s1024 = sand.u32 %s303, 1
        %s1025 = smul.addr %s1024, 2
        %s1026 = scalar_lea.vmem [#allocation17], %s1025
        // Predicated region
        $region65: #{tpu_custom_call.1} parent=39 // pred_check
          %p1027 = pneg %p209
        $region66: #{tpu_custom_call.1} parent=39 // pred_check_branch
          %1029 = sbr.rel (%p1027) target = $region68
        $region67: #{tpu_custom_call.1} parent=39 // pred_region
          %s1031 = ssub.s32 32, 32
          %1032 = vsyncadd %s1003, %s1031
          %s1033 = smul.addr %s43, 2
          %s1034 = smul.addr %s1033, 16
          %s1035 = scalar_lea.hbm %s5, %s1034
          %s1037 = sshll.u32 %s1006, 4
          %s1038 = int_to_ptr.vmem [resolvable:$true] %s1037
          %1040 = dma.vmem_to_hbm [thread:$0]  %s1038, 32, %s1035, %s1003
        $region68: #{tpu_custom_call.1} parent=39 // pred_fallthru
          _
        // Predicated region
        $region69: #{tpu_custom_call.1} parent=39 // pred_check
          %p1041 = pneg %p235
        $region70: #{tpu_custom_call.1} parent=39 // pred_check_branch
          %1043 = sbr.rel (%p1041) target = $region72
        $region71: #{tpu_custom_call.1} parent=39 // pred_region
          %s1045 = ssub.s32 32, 32
          %1046 = vsyncadd %s1008, %s1045
          %s1047 = smul.addr %s43, 2
          %s1048 = smul.addr %s1047, 16
          %s1049 = scalar_lea.hbm %s6, %s1048
          %s1051 = sshll.u32 %s1011, 4
          %s1052 = int_to_ptr.vmem [resolvable:$true] %s1051
          %1054 = dma.vmem_to_hbm [thread:$0]  %s1052, 32, %s1049, %s1008
        $region72: #{tpu_custom_call.1} parent=39 // pred_fallthru
          _
        // Predicated region
        $region73: #{tpu_custom_call.1} parent=39 // pred_check
          %p1055 = pneg %p261
        $region74: #{tpu_custom_call.1} parent=39 // pred_check_branch
          %1057 = sbr.rel (%p1055) target = $region76
        $region75: #{tpu_custom_call.1} parent=39 // pred_region
          %s1059 = ssub.s32 32, 32
          %1060 = vsyncadd %s1013, %s1059
          %s1061 = smul.addr %s43, 2
          %s1062 = smul.addr %s1061, 16
          %s1063 = scalar_lea.hbm %s7, %s1062
          %s1065 = sshll.u32 %s1016, 4
          %s1066 = int_to_ptr.vmem [resolvable:$true] %s1065
          %1068 = dma.vmem_to_hbm [thread:$0]  %s1066, 32, %s1063, %s1013
        $region76: #{tpu_custom_call.1} parent=39 // pred_fallthru
          _
        // Predicated region
        $region77: #{tpu_custom_call.1} parent=39 // pred_check
          %p1069 = pneg %p287
        $region78: #{tpu_custom_call.1} parent=39 // pred_check_branch
          %1071 = sbr.rel (%p1069) target = $region80
        $region79: #{tpu_custom_call.1} parent=39 // pred_region
          %s1073 = ssub.s32 32, 32
          %1074 = vsyncadd %s1018, %s1073
          %s1075 = smul.addr %s43, 2
          %s1076 = smul.addr %s1075, 16
          %s1077 = scalar_lea.hbm %s8, %s1076
          %s1079 = sshll.u32 %s1021, 4
          %s1080 = int_to_ptr.vmem [resolvable:$true] %s1079
          %1082 = dma.vmem_to_hbm [thread:$0]  %s1080, 32, %s1077, %s1018
        $region80: #{tpu_custom_call.1} parent=39 // pred_fallthru
          _
        // Predicated region
        $region81: #{tpu_custom_call.1} parent=39 // pred_check
          %p1083 = pneg %p313
        $region82: #{tpu_custom_call.1} parent=39 // pred_check_branch
          %1085 = sbr.rel (%p1083) target = $region84
        $region83: #{tpu_custom_call.1} parent=39 // pred_region
          %s1087 = ssub.s32 32, 32
          %1088 = vsyncadd %s1023, %s1087
          %s1089 = smul.addr %s43, 2
          %s1090 = smul.addr %s1089, 16
          %s1091 = scalar_lea.hbm %s9, %s1090
          %s1093 = sshll.u32 %s1026, 4
          %s1094 = int_to_ptr.vmem [resolvable:$true] %s1093
          %1096 = dma.vmem_to_hbm [thread:$0]  %s1094, 32, %s1091, %s1023
        $region84: #{tpu_custom_call.1} parent=39 // pred_fallthru
          _
      $region40: #{tpu_custom_call.1} parent=5 // pred_fallthru
        _
      %p1097 = scmp.le.s32.totalorder 2, %s34
      // Predicated region
      $region85: #{tpu_custom_call.1} parent=5 // pred_check
        %p1098 = pneg %p1097
      $region86: #{tpu_custom_call.1} parent=5 // pred_check_branch
        %1100 = sbr.rel (%p1098) target = $region88
      $region87: #{tpu_custom_call.1} parent=5 // pred_region
        %s1101 = ssub.s32 %s34, 2
        // Predicated region
        $region89: #{tpu_custom_call.1} parent=87 // pred_check
          %p1102 = pneg %p215
        $region90: #{tpu_custom_call.1} parent=87 // pred_check_branch
          %1104 = sbr.rel (%p1102) target = $region92
        $region91: #{tpu_custom_call.1} parent=87 // pred_region
          %s1105 = sand.u32 %s200, 1
          %s1106 = scalar_lea.sflag [#allocation4], %s1105
          %s1107 = sand.u32 %s200, 1
          %s1108 = smul.addr %s1107, 2
          %s1109 = scalar_lea.vmem [#allocation11], %s1108
          %1110 = dma.done %s1106, 32
        $region92: #{tpu_custom_call.1} parent=87 // pred_fallthru
          _
        // Predicated region
        $region93: #{tpu_custom_call.1} parent=87 // pred_check
          %p1111 = pneg %p241
        $region94: #{tpu_custom_call.1} parent=87 // pred_check_branch
          %1113 = sbr.rel (%p1111) target = $region96
        $region95: #{tpu_custom_call.1} parent=87 // pred_region
          %s1114 = sand.u32 %s40, 1
          %s1115 = scalar_lea.sflag [#allocation13], %s1114
          %s1116 = sand.u32 %s226, 1
          %s1117 = smul.addr %s1116, 2
          %s1118 = scalar_lea.vmem [#allocation12], %s1117
          %1119 = dma.done %s1115, 32
        $region96: #{tpu_custom_call.1} parent=87 // pred_fallthru
          _
        // Predicated region
        $region97: #{tpu_custom_call.1} parent=87 // pred_check
          %p1120 = pneg %p267
        $region98: #{tpu_custom_call.1} parent=87 // pred_check_branch
          %1122 = sbr.rel (%p1120) target = $region100
        $region99: #{tpu_custom_call.1} parent=87 // pred_region
          %s1123 = sand.u32 %s40, 1
          %s1124 = scalar_lea.sflag [#allocation13], %s1123
          %s1125 = sand.u32 %s252, 1
          %s1126 = smul.addr %s1125, 2
          %s1127 = scalar_lea.vmem [#allocation14], %s1126
          %1128 = dma.done %s1124, 32
        $region100: #{tpu_custom_call.1} parent=87 // pred_fallthru
          _
        // Predicated region
        $region101: #{tpu_custom_call.1} parent=87 // pred_check
          %p1129 = pneg %p293
        $region102: #{tpu_custom_call.1} parent=87 // pred_check_branch
          %1131 = sbr.rel (%p1129) target = $region104
        $region103: #{tpu_custom_call.1} parent=87 // pred_region
          %s1132 = sand.u32 %s40, 1
          %s1133 = scalar_lea.sflag [#allocation16], %s1132
          %s1134 = sand.u32 %s278, 1
          %s1135 = smul.addr %s1134, 2
          %s1136 = scalar_lea.vmem [#allocation15], %s1135
          %1137 = dma.done %s1133, 32
        $region104: #{tpu_custom_call.1} parent=87 // pred_fallthru
          _
        // Predicated region
        $region105: #{tpu_custom_call.1} parent=87 // pred_check
          %p1138 = pneg %p319
        $region106: #{tpu_custom_call.1} parent=87 // pred_check_branch
          %1140 = sbr.rel (%p1138) target = $region108
        $region107: #{tpu_custom_call.1} parent=87 // pred_region
          %s1141 = sand.u32 %s40, 1
          %s1142 = scalar_lea.sflag [#allocation16], %s1141
          %s1143 = sand.u32 %s304, 1
          %s1144 = smul.addr %s1143, 2
          %s1145 = scalar_lea.vmem [#allocation17], %s1144
          %1146 = dma.done %s1142, 32
        $region108: #{tpu_custom_call.1} parent=87 // pred_fallthru
          _
      $region88: #{tpu_custom_call.1} parent=5 // pred_fallthru
        _
    $region6: #{tpu_custom_call.1} parent=1 // loop_footer
      %s38 = sadd.s32 1, %s34
    $region7: #{tpu_custom_call.1} parent=1 // loop_footer_branch
      %33 = sbr.rel target = $region3
    $region8: #{tpu_custom_call.1} parent=1 // loop_exit
      _
    %1147 = vsyncpa [#allocation3], 1
    %s1148 = scalar_lea.sflag [#allocation3], 1
    %1149 = vsyncpa %s1148, 1
    %1150 = vsyncpa [#allocation6], 1
    %s1151 = scalar_lea.sflag [#allocation6], 1
    %1152 = vsyncpa %s1151, 1
    %1153 = vsyncpa [#allocation9], 1
    %s1154 = scalar_lea.sflag [#allocation9], 1
    %1155 = vsyncpa %s1154, 1
    %1156 = vsyncpa [#allocation4], 1
    %s1157 = scalar_lea.sflag [#allocation4], 1
    %1158 = vsyncpa %s1157, 1
    %1159 = vsyncpa [#allocation13], 1
    %s1160 = scalar_lea.sflag [#allocation13], 1
    %1161 = vsyncpa %s1160, 1
    %1162 = vsyncpa [#allocation16], 1
    %s1163 = scalar_lea.sflag [#allocation16], 1
    %1164 = vsyncpa %s1163, 1

</llo_original>
